<compile_context>
chip_gen: v7x
topology: tpu7x:2x2x1
jax: 0.10.0
libtpu: 0.0.40
codegen_flags: <defaults>
</compile_context>

<pallas_src>
import jax
import jax.numpy as jnp
from jax.experimental import pallas as pl
from jax.experimental.pallas import tpu as pltpu

LATENT_DIMS = 2
IN_DIM = 784
HID_DIM = 512
DEFAULT_TILE_B = 256


def _round_up(n, m):
    return ((n + m - 1) // m) * m


def autoencoder_kernel(x_ref,
                       w1_ref, b1_ref,
                       wm_ref, bm_ref,
                       w4_ref, b4_ref,
                       o_ref):
    x = x_ref[...]

    # Encoder: Linear(784, 512) + ReLU
    h = jnp.dot(x, w1_ref[...], preferred_element_type=jnp.float32) + b1_ref[...]
    h = jnp.maximum(h, 0.0)

    # Fused latent stage: relu(h @ (w2 @ w3) + (b2 @ w3 + b3))
    d = jnp.dot(h, wm_ref[...], preferred_element_type=jnp.float32) + bm_ref[...]
    d = jnp.maximum(d, 0.0)

    # Decoder: Linear(512, 784) + Sigmoid
    y = jnp.dot(d, w4_ref[...], preferred_element_type=jnp.float32) + b4_ref[...]
    o_ref[...] = jax.nn.sigmoid(y)


def autoencoder_forward(x, params, tile_b=DEFAULT_TILE_B):
    """x: [B, 784] float32 -> [B, 784] float32."""
    w1, b1, w2, b2, w3, b3, w4, b4 = params
    B = x.shape[0]

    # Fold the two latent (dim-2) matmuls into one dense 512x512 matmul outside the kernel.
    # TODO(synk): if the latent code z must be materialized separately, keep w2/w3 unfused.
    w_mid = jnp.dot(w2, w3, preferred_element_type=jnp.float32)
    b_mid = jnp.dot(b2, w3, preferred_element_type=jnp.float32) + b3

    # Pick a batch tile: >=256 rows for big batches (good MXU M on v6e/v7x, multiple of
    # 128 for v5e), shrink for tiny batches, pad B to a tile multiple.
    tb = min(tile_b, _round_up(B, 8))
    b_pad = _round_up(B, tb)
    if b_pad != B:
        x = jnp.pad(x, ((0, b_pad - B), (0, 0)))
    grid = (b_pad // tb,)

    def resident(a):  # weights/biases: constant block index -> stay resident in VMEM
        return pl.BlockSpec(a.shape, lambda i: (0,) * a.ndim)

    flops = 2 * b_pad * (IN_DIM * HID_DIM + HID_DIM * HID_DIM + HID_DIM * IN_DIM)
    bytes_accessed = 4 * (2 * b_pad * IN_DIM
                          + w1.size + b1.size + w_mid.size + b_mid.size
                          + w4.size + b4.size)
    cost = pl.CostEstimate(flops=flops,
                           transcendentals=b_pad * IN_DIM,
                           bytes_accessed=bytes_accessed)

    out = pl.pallas_call(
        autoencoder_kernel,
        out_shape=jax.ShapeDtypeStruct((b_pad, IN_DIM), jnp.float32),
        grid=grid,
        in_specs=[pl.BlockSpec((tb, IN_DIM), lambda i: (i, 0)),
                  resident(w1), resident(b1),
                  resident(w_mid), resident(b_mid),
                  resident(w4), resident(b4)],
        out_specs=pl.BlockSpec((tb, IN_DIM), lambda i: (i, 0)),
        compiler_params=pltpu.CompilerParams(
            dimension_semantics=("parallel",)),
        cost_estimate=cost,
    )(x, w1, b1, w_mid, b_mid, w4, b4)

    return out[:B]


def init_params(key):
    """PyTorch-default-like Linear init (U[-1/sqrt(fan_in), +1/sqrt(fan_in)]).
    Weights stored [in, out]; biases as [1, out] for TPU-friendly 2-D broadcast."""
    def linear(k, fan_in, fan_out):
        kw, kb = jax.random.split(k)
        bound = 1.0 / jnp.sqrt(fan_in)
        w = jax.random.uniform(kw, (fan_in, fan_out), jnp.float32, -bound, bound)
        b = jax.random.uniform(kb, (1, fan_out), jnp.float32, -bound, bound)
        return w, b

    k1, k2, k3, k4 = jax.random.split(key, 4)
    w1, b1 = linear(k1, IN_DIM, HID_DIM)       # encoder Linear(784, 512)
    w2, b2 = linear(k2, HID_DIM, LATENT_DIMS)  # encoder Linear(512, 2)
    w3, b3 = linear(k3, LATENT_DIMS, HID_DIM)  # decoder Linear(2, 512)
    w4, b4 = linear(k4, HID_DIM, IN_DIM)       # decoder Linear(512, 784)
    return (w1, b1, w2, b2, w3, b3, w4, b4)


def reference_forward(x, params):
    """Un-fused reference matching the original PyTorch module semantics."""
    w1, b1, w2, b2, w3, b3, w4, b4 = params
    h = jnp.maximum(x @ w1 + b1, 0.0)
    z = h @ w2 + b2
    d = jnp.maximum(z @ w3 + b3, 0.0)
    return jax.nn.sigmoid(d @ w4 + b4)


if __name__ == "__main__":
    key = jax.random.PRNGKey(0)
    k_params, k_x = jax.random.split(key)

    params = init_params(k_params)
    B = 8
    x = jax.random.uniform(k_x, (B, IN_DIM), jnp.float32)  # MNIST-like flattened input

    out = autoencoder_forward(x, params)
    out = jax.block_until_ready(out)

    ref = reference_forward(x, params)
    assert out.shape == (B, IN_DIM)
    assert jnp.allclose(out, ref, atol=2e-5, rtol=1e-4), float(jnp.max(jnp.abs(out - ref)))

    print("KERNEL_OK")
</pallas_src>

<mosaic_0001>
module attributes {stable_mosaic.version = 11 : i64} {
  func.func @autoencoder_kernel(%arg0: i32, %arg1: memref<8x784xf32, #tpu.memory_space<vmem>>, %arg2: memref<784x512xf32, #tpu.memory_space<vmem>>, %arg3: memref<1x512xf32, #tpu.memory_space<vmem>>, %arg4: memref<512x512xf32, #tpu.memory_space<vmem>>, %arg5: memref<1x512xf32, #tpu.memory_space<vmem>>, %arg6: memref<512x784xf32, #tpu.memory_space<vmem>>, %arg7: memref<1x784xf32, #tpu.memory_space<vmem>>, %arg8: memref<8x784xf32, #tpu.memory_space<vmem>>) attributes {dimension_semantics = [#tpu.dimension_semantics<parallel>], iteration_bounds = array<i64: 1>, scalar_prefetch = 0 : i64, scratch_operands = 0 : i64, tpu.core_type = #tpu.core_type<tc>, window_params = [{transform_indices = @transform_0, window_bounds = array<i64: 8, 784>}, {pipeline_mode = #tpu.pipeline_mode<synchronous>, transform_indices = @transform_1, window_bounds = array<i64: 784, 512>}, {pipeline_mode = #tpu.pipeline_mode<synchronous>, transform_indices = @transform_2, window_bounds = array<i64: 1, 512>}, {pipeline_mode = #tpu.pipeline_mode<synchronous>, transform_indices = @transform_3, window_bounds = array<i64: 512, 512>}, {pipeline_mode = #tpu.pipeline_mode<synchronous>, transform_indices = @transform_4, window_bounds = array<i64: 1, 512>}, {pipeline_mode = #tpu.pipeline_mode<synchronous>, transform_indices = @transform_5, window_bounds = array<i64: 512, 784>}, {pipeline_mode = #tpu.pipeline_mode<synchronous>, transform_indices = @transform_6, window_bounds = array<i64: 1, 784>}, {transform_indices = @transform_7, window_bounds = array<i64: 8, 784>}]} {
    %c0 = arith.constant 0 : index
    %c0_0 = arith.constant 0 : index
    %0 = vector.load %arg1[%c0, %c0_0] : memref<8x784xf32, #tpu.memory_space<vmem>>, vector<8x784xf32>
    %c0_1 = arith.constant 0 : index
    %c0_2 = arith.constant 0 : index
    %1 = vector.load %arg2[%c0_1, %c0_2] : memref<784x512xf32, #tpu.memory_space<vmem>>, vector<784x512xf32>
    %cst = arith.constant dense<0.000000e+00> : vector<8x512xf32>
    %2 = tpu.matmul %0, %1, %cst {dimension_numbers = #tpu.dot_dimension_numbers<[1], [0], [0], [1], [0, 0, 1, 1], [], []>} : vector<8x784xf32>, vector<784x512xf32>, vector<8x512xf32> -> vector<8x512xf32>
    %c0_3 = arith.constant 0 : index
    %c0_4 = arith.constant 0 : index
    %3 = vector.load %arg3[%c0_3, %c0_4] : memref<1x512xf32, #tpu.memory_space<vmem>>, vector<1x512xf32>
    %4 = vector.broadcast %3 : vector<1x512xf32> to vector<8x512xf32>
    %5 = arith.addf %2, %4 : vector<8x512xf32>
    %cst_5 = arith.constant 0.000000e+00 : f32
    %6 = vector.broadcast %cst_5 : f32 to vector<8x512xf32>
    %7 = arith.maximumf %5, %6 : vector<8x512xf32>
    %c0_6 = arith.constant 0 : index
    %c0_7 = arith.constant 0 : index
    %8 = vector.load %arg4[%c0_6, %c0_7] : memref<512x512xf32, #tpu.memory_space<vmem>>, vector<512x512xf32>
    %cst_8 = arith.constant dense<0.000000e+00> : vector<8x512xf32>
    %9 = tpu.matmul %7, %8, %cst_8 {dimension_numbers = #tpu.dot_dimension_numbers<[1], [0], [0], [1], [0, 0, 1, 1], [], []>} : vector<8x512xf32>, vector<512x512xf32>, vector<8x512xf32> -> vector<8x512xf32>
    %c0_9 = arith.constant 0 : index
    %c0_10 = arith.constant 0 : index
    %10 = vector.load %arg5[%c0_9, %c0_10] : memref<1x512xf32, #tpu.memory_space<vmem>>, vector<1x512xf32>
    %11 = vector.broadcast %10 : vector<1x512xf32> to vector<8x512xf32>
    %12 = arith.addf %9, %11 : vector<8x512xf32>
    %cst_11 = arith.constant 0.000000e+00 : f32
    %13 = vector.broadcast %cst_11 : f32 to vector<8x512xf32>
    %14 = arith.maximumf %12, %13 : vector<8x512xf32>
    %c0_12 = arith.constant 0 : index
    %c0_13 = arith.constant 0 : index
    %15 = vector.load %arg6[%c0_12, %c0_13] : memref<512x784xf32, #tpu.memory_space<vmem>>, vector<512x784xf32>
    %cst_14 = arith.constant dense<0.000000e+00> : vector<8x784xf32>
    %16 = tpu.matmul %14, %15, %cst_14 {dimension_numbers = #tpu.dot_dimension_numbers<[1], [0], [0], [1], [0, 0, 1, 1], [], []>} : vector<8x512xf32>, vector<512x784xf32>, vector<8x784xf32> -> vector<8x784xf32>
    %c0_15 = arith.constant 0 : index
    %c0_16 = arith.constant 0 : index
    %17 = vector.load %arg7[%c0_15, %c0_16] : memref<1x784xf32, #tpu.memory_space<vmem>>, vector<1x784xf32>
    %18 = vector.broadcast %17 : vector<1x784xf32> to vector<8x784xf32>
    %19 = arith.addf %16, %18 : vector<8x784xf32>
    %20 = arith.negf %19 : vector<8x784xf32>
    %21 = math.exp %20 : vector<8x784xf32>
    %cst_17 = arith.constant 1.000000e+00 : f32
    %22 = vector.broadcast %cst_17 : f32 to vector<8x784xf32>
    %23 = arith.addf %22, %21 : vector<8x784xf32>
    %24 = arith.divf %22, %23 : vector<8x784xf32>
    %c0_18 = arith.constant 0 : index
    %c0_19 = arith.constant 0 : index
    %25 = vector.load %arg8[%c0_18, %c0_19] : memref<8x784xf32, #tpu.memory_space<vmem>>, vector<8x784xf32>
    tpu.vector_store %arg8[%c0_18, %c0_19], %24 {strides = array<i32>} : memref<8x784xf32, #tpu.memory_space<vmem>>, vector<8x784xf32>,
    return
  }
  func.func @transform_0(%arg0: i32) -> (i32, i32) {
    %c0_i32 = arith.constant 0 : i32
    %c0_i32_0 = arith.constant 0 : i32
    return %arg0, %c0_i32 : i32, i32
  }
  func.func @transform_1(%arg0: i32) -> (i32, i32) {
    %c0_i32 = arith.constant 0 : i32
    %c0_i32_0 = arith.constant 0 : i32
    %c0_i32_1 = arith.constant 0 : i32
    return %c0_i32, %c0_i32_0 : i32, i32
  }
  func.func @transform_2(%arg0: i32) -> (i32, i32) {
    %c0_i32 = arith.constant 0 : i32
    %c0_i32_0 = arith.constant 0 : i32
    %c0_i32_1 = arith.constant 0 : i32
    return %c0_i32, %c0_i32_0 : i32, i32
  }
  func.func @transform_3(%arg0: i32) -> (i32, i32) {
    %c0_i32 = arith.constant 0 : i32
    %c0_i32_0 = arith.constant 0 : i32
    %c0_i32_1 = arith.constant 0 : i32
    return %c0_i32, %c0_i32_0 : i32, i32
  }
  func.func @transform_4(%arg0: i32) -> (i32, i32) {
    %c0_i32 = arith.constant 0 : i32
    %c0_i32_0 = arith.constant 0 : i32
    %c0_i32_1 = arith.constant 0 : i32
    return %c0_i32, %c0_i32_0 : i32, i32
  }
  func.func @transform_5(%arg0: i32) -> (i32, i32) {
    %c0_i32 = arith.constant 0 : i32
    %c0_i32_0 = arith.constant 0 : i32
    %c0_i32_1 = arith.constant 0 : i32
    return %c0_i32, %c0_i32_0 : i32, i32
  }
  func.func @transform_6(%arg0: i32) -> (i32, i32) {
    %c0_i32 = arith.constant 0 : i32
    %c0_i32_0 = arith.constant 0 : i32
    %c0_i32_1 = arith.constant 0 : i32
    return %c0_i32, %c0_i32_0 : i32, i32
  }
  func.func @transform_7(%arg0: i32) -> (i32, i32) {
    %c0_i32 = arith.constant 0 : i32
    %c0_i32_0 = arith.constant 0 : i32
    return %arg0, %c0_i32 : i32, i32
  }
}

</mosaic_0001>

<llo_original>
// kernel: tpu_custom_call.1
$region0: #{tpu_custom_call.1}
  #allocation0 [shape = 'u32[]', space=smem, size = 0x4, offset = 0x4, fixed_abs, tag = 'smem constant byte address 0x4 - core index']
  #allocation1 [shape = 'u32[144,128]{1,0:T(1,128)}', space=vmem, size = 0x12000, scoped, tag = 'internal scratch']
  %s0 = inlined_call_operand.vmem [shape: f32[8,784], index: 0, kind: input, shape index: {}]
  %s1 = inlined_call_operand.vmem [shape: f32[784,512], index: 1, kind: input, shape index: {}]
  %s2 = inlined_call_operand.vmem [shape: f32[1,512], index: 2, kind: input, shape index: {}]
  %s3 = inlined_call_operand.vmem [shape: f32[512,512], index: 3, kind: input, shape index: {}]
  %s4 = inlined_call_operand.vmem [shape: f32[1,512], index: 4, kind: input, shape index: {}]
  %s5 = inlined_call_operand.vmem [shape: f32[512,784], index: 5, kind: input, shape index: {}]
  %s6 = inlined_call_operand.vmem [shape: f32[1,784], index: 6, kind: input, shape index: {}]
  %s7 = inlined_call_operand.hbm [shape: f32[8,784], index: 7, kind: output, shape index: {}]
  %s8 = sld [smem:[#allocation0]]
  $region38: #{tpu_custom_call.1} parent=0
    _
  %s10 = ssub.s32 1, %s8
  %s11 = scalar_select 0, %s10, %s8
  $region1: #{tpu_custom_call.1} parent=0
    #allocation2 [shape = 'u8[28672]{0}', space=vmem, size = 0x7000, scoped, tag = 'output window, operand 0, single buffered']
    #allocation3 [shape = 's32[1]{0}', space=sflag, size = 0x4, scoped, tag = 'scoped memory for tpu_custom_call.1']
    %12 = vsyncpa [#allocation3], 0
    // Predicated region
    $region2: #{tpu_custom_call.1} parent=1 // pred_check
      _
    $region3: #{tpu_custom_call.1} parent=1 // pred_check_branch
      %14 = sbr.rel (0) target = $region5
    $region4: #{tpu_custom_call.1} parent=1 // pred_region
      _
    $region5: #{tpu_custom_call.1} parent=1 // pred_fallthru
      _
    // Predicated region
    $region6: #{tpu_custom_call.1} parent=1 // pred_check
      _
    $region7: #{tpu_custom_call.1} parent=1 // pred_check_branch
      %16 = sbr.rel (0) target = $region9
    $region8: #{tpu_custom_call.1} parent=1 // pred_region
      _
    $region9: #{tpu_custom_call.1} parent=1 // pred_fallthru
      _
    // Predicated region
    $region10: #{tpu_custom_call.1} parent=1 // pred_check
      _
    $region11: #{tpu_custom_call.1} parent=1 // pred_check_branch
      %18 = sbr.rel (0) target = $region13
    $region12: #{tpu_custom_call.1} parent=1 // pred_region
      _
    $region13: #{tpu_custom_call.1} parent=1 // pred_fallthru
      _
    // Predicated region
    $region14: #{tpu_custom_call.1} parent=1 // pred_check
      _
    $region15: #{tpu_custom_call.1} parent=1 // pred_check_branch
      %20 = sbr.rel (0) target = $region17
    $region16: #{tpu_custom_call.1} parent=1 // pred_region
      _
    $region17: #{tpu_custom_call.1} parent=1 // pred_fallthru
      _
    // Predicated region
    $region18: #{tpu_custom_call.1} parent=1 // pred_check
      _
    $region19: #{tpu_custom_call.1} parent=1 // pred_check_branch
      %22 = sbr.rel (0) target = $region21
    $region20: #{tpu_custom_call.1} parent=1 // pred_region
      _
    $region21: #{tpu_custom_call.1} parent=1 // pred_fallthru
      _
    // Predicated region
    $region22: #{tpu_custom_call.1} parent=1 // pred_check
      _
    $region23: #{tpu_custom_call.1} parent=1 // pred_check_branch
      %24 = sbr.rel (0) target = $region25
    $region24: #{tpu_custom_call.1} parent=1 // pred_region
      _
    $region25: #{tpu_custom_call.1} parent=1 // pred_fallthru
      _
    // Predicated region
    $region26: #{tpu_custom_call.1} parent=1 // pred_check
      _
    $region27: #{tpu_custom_call.1} parent=1 // pred_check_branch
      %26 = sbr.rel (0) target = $region29
    $region28: #{tpu_custom_call.1} parent=1 // pred_region
      _
    $region29: #{tpu_custom_call.1} parent=1 // pred_fallthru
      _
    %v27 = vld [vmem:[%s0] sm:$0xff]
    %v28 = vld [vmem:[%s0 + $0x8] sm:$0xff]
    %v29 = vld [vmem:[%s0 + $0x10] sm:$0xff]
    %v30 = vld [vmem:[%s0 + $0x18] sm:$0xff]
    %v31 = vld [vmem:[%s0 + $0x20] sm:$0xff]
    %v32 = vld [vmem:[%s0 + $0x28] sm:$0xff]
    %v33 = vld [vmem:[%s0 + $0x30] sm:$0xff]
    %v34 = vld [vmem:[%s1] sm:$0xff]
    %v35 = vld [vmem:[%s1 + $0x8] sm:$0xff]
    %v36 = vld [vmem:[%s1 + $0x10] sm:$0xff]
    %v37 = vld [vmem:[%s1 + $0x18] sm:$0xff]
    %v38 = vld [vmem:[%s1 + $0x20] sm:$0xff]
    %v39 = vld [vmem:[%s1 + $0x28] sm:$0xff]
    %v40 = vld [vmem:[%s1 + $0x30] sm:$0xff]
    %v41 = vld [vmem:[%s1 + $0x38] sm:$0xff]
    %v42 = vld [vmem:[%s1 + $0x40] sm:$0xff]
    %v43 = vld [vmem:[%s1 + $0x48] sm:$0xff]
    %v44 = vld [vmem:[%s1 + $0x50] sm:$0xff]
    %v45 = vld [vmem:[%s1 + $0x58] sm:$0xff]
    %v46 = vld [vmem:[%s1 + $0x60] sm:$0xff]
    %v47 = vld [vmem:[%s1 + $0x68] sm:$0xff]
    %v48 = vld [vmem:[%s1 + $0x70] sm:$0xff]
    %v49 = vld [vmem:[%s1 + $0x78] sm:$0xff]
    %v50 = vld [vmem:[%s1 + $0x80] sm:$0xff]
    %v51 = vld [vmem:[%s1 + $0x88] sm:$0xff]
    %v52 = vld [vmem:[%s1 + $0x90] sm:$0xff]
    %v53 = vld [vmem:[%s1 + $0x98] sm:$0xff]
    %v54 = vld [vmem:[%s1 + $0xa0] sm:$0xff]
    %v55 = vld [vmem:[%s1 + $0xa8] sm:$0xff]
    %v56 = vld [vmem:[%s1 + $0xb0] sm:$0xff]
    %v57 = vld [vmem:[%s1 + $0xb8] sm:$0xff]
    %v58 = vld [vmem:[%s1 + $0xc0] sm:$0xff]
    %v59 = vld [vmem:[%s1 + $0xc8] sm:$0xff]
    %v60 = vld [vmem:[%s1 + $0xd0] sm:$0xff]
    %v61 = vld [vmem:[%s1 + $0xd8] sm:$0xff]
    %v62 = vld [vmem:[%s1 + $0xe0] sm:$0xff]
    %v63 = vld [vmem:[%s1 + $0xe8] sm:$0xff]
    %v64 = vld [vmem:[%s1 + $0xf0] sm:$0xff]
    %v65 = vld [vmem:[%s1 + $0xf8] sm:$0xff]
    %v66 = vld [vmem:[%s1 + $0x100] sm:$0xff]
    %v67 = vld [vmem:[%s1 + $0x108] sm:$0xff]
    %v68 = vld [vmem:[%s1 + $0x110] sm:$0xff]
    %v69 = vld [vmem:[%s1 + $0x118] sm:$0xff]
    %v70 = vld [vmem:[%s1 + $0x120] sm:$0xff]
    %v71 = vld [vmem:[%s1 + $0x128] sm:$0xff]
    %v72 = vld [vmem:[%s1 + $0x130] sm:$0xff]
    %v73 = vld [vmem:[%s1 + $0x138] sm:$0xff]
    %v74 = vld [vmem:[%s1 + $0x140] sm:$0xff]
    %v75 = vld [vmem:[%s1 + $0x148] sm:$0xff]
    %v76 = vld [vmem:[%s1 + $0x150] sm:$0xff]
    %v77 = vld [vmem:[%s1 + $0x158] sm:$0xff]
    %v78 = vld [vmem:[%s1 + $0x160] sm:$0xff]
    %v79 = vld [vmem:[%s1 + $0x168] sm:$0xff]
    %v80 = vld [vmem:[%s1 + $0x170] sm:$0xff]
    %v81 = vld [vmem:[%s1 + $0x178] sm:$0xff]
    %v82 = vld [vmem:[%s1 + $0x180] sm:$0xff]
    %v83 = vld [vmem:[%s1 + $0x188] sm:$0xff]
    %v84 = vld [vmem:[%s1 + $0x190] sm:$0xff]
    %v85 = vld [vmem:[%s1 + $0x198] sm:$0xff]
    %v86 = vld [vmem:[%s1 + $0x1a0] sm:$0xff]
    %v87 = vld [vmem:[%s1 + $0x1a8] sm:$0xff]
    %v88 = vld [vmem:[%s1 + $0x1b0] sm:$0xff]
    %v89 = vld [vmem:[%s1 + $0x1b8] sm:$0xff]
    %v90 = vld [vmem:[%s1 + $0x1c0] sm:$0xff]
    %v91 = vld [vmem:[%s1 + $0x1c8] sm:$0xff]
    %v92 = vld [vmem:[%s1 + $0x1d0] sm:$0xff]
    %v93 = vld [vmem:[%s1 + $0x1d8] sm:$0xff]
    %v94 = vld [vmem:[%s1 + $0x1e0] sm:$0xff]
    %v95 = vld [vmem:[%s1 + $0x1e8] sm:$0xff]
    %v96 = vld [vmem:[%s1 + $0x1f0] sm:$0xff]
    %v97 = vld [vmem:[%s1 + $0x1f8] sm:$0xff]
    %v98 = vld [vmem:[%s1 + $0x200] sm:$0xff]
    %v99 = vld [vmem:[%s1 + $0x208] sm:$0xff]
    %v100 = vld [vmem:[%s1 + $0x210] sm:$0xff]
    %v101 = vld [vmem:[%s1 + $0x218] sm:$0xff]
    %v102 = vld [vmem:[%s1 + $0x220] sm:$0xff]
    %v103 = vld [vmem:[%s1 + $0x228] sm:$0xff]
    %v104 = vld [vmem:[%s1 + $0x230] sm:$0xff]
    %v105 = vld [vmem:[%s1 + $0x238] sm:$0xff]
    %v106 = vld [vmem:[%s1 + $0x240] sm:$0xff]
    %v107 = vld [vmem:[%s1 + $0x248] sm:$0xff]
    %v108 = vld [vmem:[%s1 + $0x250] sm:$0xff]
    %v109 = vld [vmem:[%s1 + $0x258] sm:$0xff]
    %v110 = vld [vmem:[%s1 + $0x260] sm:$0xff]
    %v111 = vld [vmem:[%s1 + $0x268] sm:$0xff]
    %v112 = vld [vmem:[%s1 + $0x270] sm:$0xff]
    %v113 = vld [vmem:[%s1 + $0x278] sm:$0xff]
    %v114 = vld [vmem:[%s1 + $0x280] sm:$0xff]
    %v115 = vld [vmem:[%s1 + $0x288] sm:$0xff]
    %v116 = vld [vmem:[%s1 + $0x290] sm:$0xff]
    %v117 = vld [vmem:[%s1 + $0x298] sm:$0xff]
    %v118 = vld [vmem:[%s1 + $0x2a0] sm:$0xff]
    %v119 = vld [vmem:[%s1 + $0x2a8] sm:$0xff]
    %v120 = vld [vmem:[%s1 + $0x2b0] sm:$0xff]
    %v121 = vld [vmem:[%s1 + $0x2b8] sm:$0xff]
    %v122 = vld [vmem:[%s1 + $0x2c0] sm:$0xff]
    %v123 = vld [vmem:[%s1 + $0x2c8] sm:$0xff]
    %v124 = vld [vmem:[%s1 + $0x2d0] sm:$0xff]
    %v125 = vld [vmem:[%s1 + $0x2d8] sm:$0xff]
    %v126 = vld [vmem:[%s1 + $0x2e0] sm:$0xff]
    %v127 = vld [vmem:[%s1 + $0x2e8] sm:$0xff]
    %v128 = vld [vmem:[%s1 + $0x2f0] sm:$0xff]
    %v129 = vld [vmem:[%s1 + $0x2f8] sm:$0xff]
    %v130 = vld [vmem:[%s1 + $0x300] sm:$0xff]
    %v131 = vld [vmem:[%s1 + $0x308] sm:$0xff]
    %v132 = vld [vmem:[%s1 + $0x310] sm:$0xff]
    %v133 = vld [vmem:[%s1 + $0x318] sm:$0xff]
    %v134 = vld [vmem:[%s1 + $0x320] sm:$0xff]
    %v135 = vld [vmem:[%s1 + $0x328] sm:$0xff]
    %v136 = vld [vmem:[%s1 + $0x330] sm:$0xff]
    %v137 = vld [vmem:[%s1 + $0x338] sm:$0xff]
    %v138 = vld [vmem:[%s1 + $0x340] sm:$0xff]
    %v139 = vld [vmem:[%s1 + $0x348] sm:$0xff]
    %v140 = vld [vmem:[%s1 + $0x350] sm:$0xff]
    %v141 = vld [vmem:[%s1 + $0x358] sm:$0xff]
    %v142 = vld [vmem:[%s1 + $0x360] sm:$0xff]
    %v143 = vld [vmem:[%s1 + $0x368] sm:$0xff]
    %v144 = vld [vmem:[%s1 + $0x370] sm:$0xff]
    %v145 = vld [vmem:[%s1 + $0x378] sm:$0xff]
    %v146 = vld [vmem:[%s1 + $0x380] sm:$0xff]
    %v147 = vld [vmem:[%s1 + $0x388] sm:$0xff]
    %v148 = vld [vmem:[%s1 + $0x390] sm:$0xff]
    %v149 = vld [vmem:[%s1 + $0x398] sm:$0xff]
    %v150 = vld [vmem:[%s1 + $0x3a0] sm:$0xff]
    %v151 = vld [vmem:[%s1 + $0x3a8] sm:$0xff]
    %v152 = vld [vmem:[%s1 + $0x3b0] sm:$0xff]
    %v153 = vld [vmem:[%s1 + $0x3b8] sm:$0xff]
    %v154 = vld [vmem:[%s1 + $0x3c0] sm:$0xff]
    %v155 = vld [vmem:[%s1 + $0x3c8] sm:$0xff]
    %v156 = vld [vmem:[%s1 + $0x3d0] sm:$0xff]
    %v157 = vld [vmem:[%s1 + $0x3d8] sm:$0xff]
    %v158 = vld [vmem:[%s1 + $0x3e0] sm:$0xff]
    %v159 = vld [vmem:[%s1 + $0x3e8] sm:$0xff]
    %v160 = vld [vmem:[%s1 + $0x3f0] sm:$0xff]
    %v161 = vld [vmem:[%s1 + $0x3f8] sm:$0xff]
    %v162 = vld [vmem:[%s1 + $0x400] sm:$0xff]
    %v163 = vld [vmem:[%s1 + $0x408] sm:$0xff]
    %v164 = vld [vmem:[%s1 + $0x410] sm:$0xff]
    %v165 = vld [vmem:[%s1 + $0x418] sm:$0xff]
    %v166 = vld [vmem:[%s1 + $0x420] sm:$0xff]
    %v167 = vld [vmem:[%s1 + $0x428] sm:$0xff]
    %v168 = vld [vmem:[%s1 + $0x430] sm:$0xff]
    %v169 = vld [vmem:[%s1 + $0x438] sm:$0xff]
    %v170 = vld [vmem:[%s1 + $0x440] sm:$0xff]
    %v171 = vld [vmem:[%s1 + $0x448] sm:$0xff]
    %v172 = vld [vmem:[%s1 + $0x450] sm:$0xff]
    %v173 = vld [vmem:[%s1 + $0x458] sm:$0xff]
    %v174 = vld [vmem:[%s1 + $0x460] sm:$0xff]
    %v175 = vld [vmem:[%s1 + $0x468] sm:$0xff]
    %v176 = vld [vmem:[%s1 + $0x470] sm:$0xff]
    %v177 = vld [vmem:[%s1 + $0x478] sm:$0xff]
    %v178 = vld [vmem:[%s1 + $0x480] sm:$0xff]
    %v179 = vld [vmem:[%s1 + $0x488] sm:$0xff]
    %v180 = vld [vmem:[%s1 + $0x490] sm:$0xff]
    %v181 = vld [vmem:[%s1 + $0x498] sm:$0xff]
    %v182 = vld [vmem:[%s1 + $0x4a0] sm:$0xff]
    %v183 = vld [vmem:[%s1 + $0x4a8] sm:$0xff]
    %v184 = vld [vmem:[%s1 + $0x4b0] sm:$0xff]
    %v185 = vld [vmem:[%s1 + $0x4b8] sm:$0xff]
    %v186 = vld [vmem:[%s1 + $0x4c0] sm:$0xff]
    %v187 = vld [vmem:[%s1 + $0x4c8] sm:$0xff]
    %v188 = vld [vmem:[%s1 + $0x4d0] sm:$0xff]
    %v189 = vld [vmem:[%s1 + $0x4d8] sm:$0xff]
    %v190 = vld [vmem:[%s1 + $0x4e0] sm:$0xff]
    %v191 = vld [vmem:[%s1 + $0x4e8] sm:$0xff]
    %v192 = vld [vmem:[%s1 + $0x4f0] sm:$0xff]
    %v193 = vld [vmem:[%s1 + $0x4f8] sm:$0xff]
    %v194 = vld [vmem:[%s1 + $0x500] sm:$0xff]
    %v195 = vld [vmem:[%s1 + $0x508] sm:$0xff]
    %v196 = vld [vmem:[%s1 + $0x510] sm:$0xff]
    %v197 = vld [vmem:[%s1 + $0x518] sm:$0xff]
    %v198 = vld [vmem:[%s1 + $0x520] sm:$0xff]
    %v199 = vld [vmem:[%s1 + $0x528] sm:$0xff]
    %v200 = vld [vmem:[%s1 + $0x530] sm:$0xff]
    %v201 = vld [vmem:[%s1 + $0x538] sm:$0xff]
    %v202 = vld [vmem:[%s1 + $0x540] sm:$0xff]
    %v203 = vld [vmem:[%s1 + $0x548] sm:$0xff]
    %v204 = vld [vmem:[%s1 + $0x550] sm:$0xff]
    %v205 = vld [vmem:[%s1 + $0x558] sm:$0xff]
    %v206 = vld [vmem:[%s1 + $0x560] sm:$0xff]
    %v207 = vld [vmem:[%s1 + $0x568] sm:$0xff]
    %v208 = vld [vmem:[%s1 + $0x570] sm:$0xff]
    %v209 = vld [vmem:[%s1 + $0x578] sm:$0xff]
    %v210 = vld [vmem:[%s1 + $0x580] sm:$0xff]
    %v211 = vld [vmem:[%s1 + $0x588] sm:$0xff]
    %v212 = vld [vmem:[%s1 + $0x590] sm:$0xff]
    %v213 = vld [vmem:[%s1 + $0x598] sm:$0xff]
    %v214 = vld [vmem:[%s1 + $0x5a0] sm:$0xff]
    %v215 = vld [vmem:[%s1 + $0x5a8] sm:$0xff]
    %v216 = vld [vmem:[%s1 + $0x5b0] sm:$0xff]
    %v217 = vld [vmem:[%s1 + $0x5b8] sm:$0xff]
    %v218 = vld [vmem:[%s1 + $0x5c0] sm:$0xff]
    %v219 = vld [vmem:[%s1 + $0x5c8] sm:$0xff]
    %v220 = vld [vmem:[%s1 + $0x5d0] sm:$0xff]
    %v221 = vld [vmem:[%s1 + $0x5d8] sm:$0xff]
    %v222 = vld [vmem:[%s1 + $0x5e0] sm:$0xff]
    %v223 = vld [vmem:[%s1 + $0x5e8] sm:$0xff]
    %v224 = vld [vmem:[%s1 + $0x5f0] sm:$0xff]
    %v225 = vld [vmem:[%s1 + $0x5f8] sm:$0xff]
    %v226 = vld [vmem:[%s1 + $0x600] sm:$0xff]
    %v227 = vld [vmem:[%s1 + $0x608] sm:$0xff]
    %v228 = vld [vmem:[%s1 + $0x610] sm:$0xff]
    %v229 = vld [vmem:[%s1 + $0x618] sm:$0xff]
    %v230 = vld [vmem:[%s1 + $0x620] sm:$0xff]
    %v231 = vld [vmem:[%s1 + $0x628] sm:$0xff]
    %v232 = vld [vmem:[%s1 + $0x630] sm:$0xff]
    %v233 = vld [vmem:[%s1 + $0x638] sm:$0xff]
    %v234 = vld [vmem:[%s1 + $0x640] sm:$0xff]
    %v235 = vld [vmem:[%s1 + $0x648] sm:$0xff]
    %v236 = vld [vmem:[%s1 + $0x650] sm:$0xff]
    %v237 = vld [vmem:[%s1 + $0x658] sm:$0xff]
    %v238 = vld [vmem:[%s1 + $0x660] sm:$0xff]
    %v239 = vld [vmem:[%s1 + $0x668] sm:$0xff]
    %v240 = vld [vmem:[%s1 + $0x670] sm:$0xff]
    %v241 = vld [vmem:[%s1 + $0x678] sm:$0xff]
    %v242 = vld [vmem:[%s1 + $0x680] sm:$0xff]
    %v243 = vld [vmem:[%s1 + $0x688] sm:$0xff]
    %v244 = vld [vmem:[%s1 + $0x690] sm:$0xff]
    %v245 = vld [vmem:[%s1 + $0x698] sm:$0xff]
    %v246 = vld [vmem:[%s1 + $0x6a0] sm:$0xff]
    %v247 = vld [vmem:[%s1 + $0x6a8] sm:$0xff]
    %v248 = vld [vmem:[%s1 + $0x6b0] sm:$0xff]
    %v249 = vld [vmem:[%s1 + $0x6b8] sm:$0xff]
    %v250 = vld [vmem:[%s1 + $0x6c0] sm:$0xff]
    %v251 = vld [vmem:[%s1 + $0x6c8] sm:$0xff]
    %v252 = vld [vmem:[%s1 + $0x6d0] sm:$0xff]
    %v253 = vld [vmem:[%s1 + $0x6d8] sm:$0xff]
    %v254 = vld [vmem:[%s1 + $0x6e0] sm:$0xff]
    %v255 = vld [vmem:[%s1 + $0x6e8] sm:$0xff]
    %v256 = vld [vmem:[%s1 + $0x6f0] sm:$0xff]
    %v257 = vld [vmem:[%s1 + $0x6f8] sm:$0xff]
    %v258 = vld [vmem:[%s1 + $0x700] sm:$0xff]
    %v259 = vld [vmem:[%s1 + $0x708] sm:$0xff]
    %v260 = vld [vmem:[%s1 + $0x710] sm:$0xff]
    %v261 = vld [vmem:[%s1 + $0x718] sm:$0xff]
    %v262 = vld [vmem:[%s1 + $0x720] sm:$0xff]
    %v263 = vld [vmem:[%s1 + $0x728] sm:$0xff]
    %v264 = vld [vmem:[%s1 + $0x730] sm:$0xff]
    %v265 = vld [vmem:[%s1 + $0x738] sm:$0xff]
    %v266 = vld [vmem:[%s1 + $0x740] sm:$0xff]
    %v267 = vld [vmem:[%s1 + $0x748] sm:$0xff]
    %v268 = vld [vmem:[%s1 + $0x750] sm:$0xff]
    %v269 = vld [vmem:[%s1 + $0x758] sm:$0xff]
    %v270 = vld [vmem:[%s1 + $0x760] sm:$0xff]
    %v271 = vld [vmem:[%s1 + $0x768] sm:$0xff]
    %v272 = vld [vmem:[%s1 + $0x770] sm:$0xff]
    %v273 = vld [vmem:[%s1 + $0x778] sm:$0xff]
    %v274 = vld [vmem:[%s1 + $0x780] sm:$0xff]
    %v275 = vld [vmem:[%s1 + $0x788] sm:$0xff]
    %v276 = vld [vmem:[%s1 + $0x790] sm:$0xff]
    %v277 = vld [vmem:[%s1 + $0x798] sm:$0xff]
    %v278 = vld [vmem:[%s1 + $0x7a0] sm:$0xff]
    %v279 = vld [vmem:[%s1 + $0x7a8] sm:$0xff]
    %v280 = vld [vmem:[%s1 + $0x7b0] sm:$0xff]
    %v281 = vld [vmem:[%s1 + $0x7b8] sm:$0xff]
    %v282 = vld [vmem:[%s1 + $0x7c0] sm:$0xff]
    %v283 = vld [vmem:[%s1 + $0x7c8] sm:$0xff]
    %v284 = vld [vmem:[%s1 + $0x7d0] sm:$0xff]
    %v285 = vld [vmem:[%s1 + $0x7d8] sm:$0xff]
    %v286 = vld [vmem:[%s1 + $0x7e0] sm:$0xff]
    %v287 = vld [vmem:[%s1 + $0x7e8] sm:$0xff]
    %v288 = vld [vmem:[%s1 + $0x7f0] sm:$0xff]
    %v289 = vld [vmem:[%s1 + $0x7f8] sm:$0xff]
    %v290 = vld [vmem:[%s1 + $0x800] sm:$0xff]
    %v291 = vld [vmem:[%s1 + $0x808] sm:$0xff]
    %v292 = vld [vmem:[%s1 + $0x810] sm:$0xff]
    %v293 = vld [vmem:[%s1 + $0x818] sm:$0xff]
    %v294 = vld [vmem:[%s1 + $0x820] sm:$0xff]
    %v295 = vld [vmem:[%s1 + $0x828] sm:$0xff]
    %v296 = vld [vmem:[%s1 + $0x830] sm:$0xff]
    %v297 = vld [vmem:[%s1 + $0x838] sm:$0xff]
    %v298 = vld [vmem:[%s1 + $0x840] sm:$0xff]
    %v299 = vld [vmem:[%s1 + $0x848] sm:$0xff]
    %v300 = vld [vmem:[%s1 + $0x850] sm:$0xff]
    %v301 = vld [vmem:[%s1 + $0x858] sm:$0xff]
    %v302 = vld [vmem:[%s1 + $0x860] sm:$0xff]
    %v303 = vld [vmem:[%s1 + $0x868] sm:$0xff]
    %v304 = vld [vmem:[%s1 + $0x870] sm:$0xff]
    %v305 = vld [vmem:[%s1 + $0x878] sm:$0xff]
    %v306 = vld [vmem:[%s1 + $0x880] sm:$0xff]
    %v307 = vld [vmem:[%s1 + $0x888] sm:$0xff]
    %v308 = vld [vmem:[%s1 + $0x890] sm:$0xff]
    %v309 = vld [vmem:[%s1 + $0x898] sm:$0xff]
    %v310 = vld [vmem:[%s1 + $0x8a0] sm:$0xff]
    %v311 = vld [vmem:[%s1 + $0x8a8] sm:$0xff]
    %v312 = vld [vmem:[%s1 + $0x8b0] sm:$0xff]
    %v313 = vld [vmem:[%s1 + $0x8b8] sm:$0xff]
    %v314 = vld [vmem:[%s1 + $0x8c0] sm:$0xff]
    %v315 = vld [vmem:[%s1 + $0x8c8] sm:$0xff]
    %v316 = vld [vmem:[%s1 + $0x8d0] sm:$0xff]
    %v317 = vld [vmem:[%s1 + $0x8d8] sm:$0xff]
    %v318 = vld [vmem:[%s1 + $0x8e0] sm:$0xff]
    %v319 = vld [vmem:[%s1 + $0x8e8] sm:$0xff]
    %v320 = vld [vmem:[%s1 + $0x8f0] sm:$0xff]
    %v321 = vld [vmem:[%s1 + $0x8f8] sm:$0xff]
    %v322 = vld [vmem:[%s1 + $0x900] sm:$0xff]
    %v323 = vld [vmem:[%s1 + $0x908] sm:$0xff]
    %v324 = vld [vmem:[%s1 + $0x910] sm:$0xff]
    %v325 = vld [vmem:[%s1 + $0x918] sm:$0xff]
    %v326 = vld [vmem:[%s1 + $0x920] sm:$0xff]
    %v327 = vld [vmem:[%s1 + $0x928] sm:$0xff]
    %v328 = vld [vmem:[%s1 + $0x930] sm:$0xff]
    %v329 = vld [vmem:[%s1 + $0x938] sm:$0xff]
    %v330 = vld [vmem:[%s1 + $0x940] sm:$0xff]
    %v331 = vld [vmem:[%s1 + $0x948] sm:$0xff]
    %v332 = vld [vmem:[%s1 + $0x950] sm:$0xff]
    %v333 = vld [vmem:[%s1 + $0x958] sm:$0xff]
    %v334 = vld [vmem:[%s1 + $0x960] sm:$0xff]
    %v335 = vld [vmem:[%s1 + $0x968] sm:$0xff]
    %v336 = vld [vmem:[%s1 + $0x970] sm:$0xff]
    %v337 = vld [vmem:[%s1 + $0x978] sm:$0xff]
    %v338 = vld [vmem:[%s1 + $0x980] sm:$0xff]
    %v339 = vld [vmem:[%s1 + $0x988] sm:$0xff]
    %v340 = vld [vmem:[%s1 + $0x990] sm:$0xff]
    %v341 = vld [vmem:[%s1 + $0x998] sm:$0xff]
    %v342 = vld [vmem:[%s1 + $0x9a0] sm:$0xff]
    %v343 = vld [vmem:[%s1 + $0x9a8] sm:$0xff]
    %v344 = vld [vmem:[%s1 + $0x9b0] sm:$0xff]
    %v345 = vld [vmem:[%s1 + $0x9b8] sm:$0xff]
    %v346 = vld [vmem:[%s1 + $0x9c0] sm:$0xff]
    %v347 = vld [vmem:[%s1 + $0x9c8] sm:$0xff]
    %v348 = vld [vmem:[%s1 + $0x9d0] sm:$0xff]
    %v349 = vld [vmem:[%s1 + $0x9d8] sm:$0xff]
    %v350 = vld [vmem:[%s1 + $0x9e0] sm:$0xff]
    %v351 = vld [vmem:[%s1 + $0x9e8] sm:$0xff]
    %v352 = vld [vmem:[%s1 + $0x9f0] sm:$0xff]
    %v353 = vld [vmem:[%s1 + $0x9f8] sm:$0xff]
    %v354 = vld [vmem:[%s1 + $0xa00] sm:$0xff]
    %v355 = vld [vmem:[%s1 + $0xa08] sm:$0xff]
    %v356 = vld [vmem:[%s1 + $0xa10] sm:$0xff]
    %v357 = vld [vmem:[%s1 + $0xa18] sm:$0xff]
    %v358 = vld [vmem:[%s1 + $0xa20] sm:$0xff]
    %v359 = vld [vmem:[%s1 + $0xa28] sm:$0xff]
    %v360 = vld [vmem:[%s1 + $0xa30] sm:$0xff]
    %v361 = vld [vmem:[%s1 + $0xa38] sm:$0xff]
    %v362 = vld [vmem:[%s1 + $0xa40] sm:$0xff]
    %v363 = vld [vmem:[%s1 + $0xa48] sm:$0xff]
    %v364 = vld [vmem:[%s1 + $0xa50] sm:$0xff]
    %v365 = vld [vmem:[%s1 + $0xa58] sm:$0xff]
    %v366 = vld [vmem:[%s1 + $0xa60] sm:$0xff]
    %v367 = vld [vmem:[%s1 + $0xa68] sm:$0xff]
    %v368 = vld [vmem:[%s1 + $0xa70] sm:$0xff]
    %v369 = vld [vmem:[%s1 + $0xa78] sm:$0xff]
    %v370 = vld [vmem:[%s1 + $0xa80] sm:$0xff]
    %v371 = vld [vmem:[%s1 + $0xa88] sm:$0xff]
    %v372 = vld [vmem:[%s1 + $0xa90] sm:$0xff]
    %v373 = vld [vmem:[%s1 + $0xa98] sm:$0xff]
    %v374 = vld [vmem:[%s1 + $0xaa0] sm:$0xff]
    %v375 = vld [vmem:[%s1 + $0xaa8] sm:$0xff]
    %v376 = vld [vmem:[%s1 + $0xab0] sm:$0xff]
    %v377 = vld [vmem:[%s1 + $0xab8] sm:$0xff]
    %v378 = vld [vmem:[%s1 + $0xac0] sm:$0xff]
    %v379 = vld [vmem:[%s1 + $0xac8] sm:$0xff]
    %v380 = vld [vmem:[%s1 + $0xad0] sm:$0xff]
    %v381 = vld [vmem:[%s1 + $0xad8] sm:$0xff]
    %v382 = vld [vmem:[%s1 + $0xae0] sm:$0xff]
    %v383 = vld [vmem:[%s1 + $0xae8] sm:$0xff]
    %v384 = vld [vmem:[%s1 + $0xaf0] sm:$0xff]
    %v385 = vld [vmem:[%s1 + $0xaf8] sm:$0xff]
    %v386 = vld [vmem:[%s1 + $0xb00] sm:$0xff]
    %v387 = vld [vmem:[%s1 + $0xb08] sm:$0xff]
    %v388 = vld [vmem:[%s1 + $0xb10] sm:$0xff]
    %v389 = vld [vmem:[%s1 + $0xb18] sm:$0xff]
    %v390 = vld [vmem:[%s1 + $0xb20] sm:$0xff]
    %v391 = vld [vmem:[%s1 + $0xb28] sm:$0xff]
    %v392 = vld [vmem:[%s1 + $0xb30] sm:$0xff]
    %v393 = vld [vmem:[%s1 + $0xb38] sm:$0xff]
    %v394 = vld [vmem:[%s1 + $0xb40] sm:$0xff]
    %v395 = vld [vmem:[%s1 + $0xb48] sm:$0xff]
    %v396 = vld [vmem:[%s1 + $0xb50] sm:$0xff]
    %v397 = vld [vmem:[%s1 + $0xb58] sm:$0xff]
    %v398 = vld [vmem:[%s1 + $0xb60] sm:$0xff]
    %v399 = vld [vmem:[%s1 + $0xb68] sm:$0xff]
    %v400 = vld [vmem:[%s1 + $0xb70] sm:$0xff]
    %v401 = vld [vmem:[%s1 + $0xb78] sm:$0xff]
    %v402 = vld [vmem:[%s1 + $0xb80] sm:$0xff]
    %v403 = vld [vmem:[%s1 + $0xb88] sm:$0xff]
    %v404 = vld [vmem:[%s1 + $0xb90] sm:$0xff]
    %v405 = vld [vmem:[%s1 + $0xb98] sm:$0xff]
    %v406 = vld [vmem:[%s1 + $0xba0] sm:$0xff]
    %v407 = vld [vmem:[%s1 + $0xba8] sm:$0xff]
    %v408 = vld [vmem:[%s1 + $0xbb0] sm:$0xff]
    %v409 = vld [vmem:[%s1 + $0xbb8] sm:$0xff]
    %v410 = vld [vmem:[%s1 + $0xbc0] sm:$0xff]
    %v411 = vld [vmem:[%s1 + $0xbc8] sm:$0xff]
    %v412 = vld [vmem:[%s1 + $0xbd0] sm:$0xff]
    %v413 = vld [vmem:[%s1 + $0xbd8] sm:$0xff]
    %v414 = vld [vmem:[%s1 + $0xbe0] sm:$0xff]
    %v415 = vld [vmem:[%s1 + $0xbe8] sm:$0xff]
    %v416 = vld [vmem:[%s1 + $0xbf0] sm:$0xff]
    %v417 = vld [vmem:[%s1 + $0xbf8] sm:$0xff]
    %v418 = vld [vmem:[%s1 + $0xc00] sm:$0xff]
    %v419 = vld [vmem:[%s1 + $0xc08] sm:$0xff]
    %v420 = vld [vmem:[%s1 + $0xc10] sm:$0xff]
    %v421 = vld [vmem:[%s1 + $0xc18] sm:$0xff]
    %v422 = vld [vmem:[%s1 + $0xc20] sm:$0xff]
    %v423 = vld [vmem:[%s1 + $0xc28] sm:$0xff]
    %v424 = vld [vmem:[%s1 + $0xc30] sm:$0xff]
    %v425 = vld [vmem:[%s1 + $0xc38] sm:$0xff]
    %v426 = vld [vmem:[%s2] sm:$0xf]
    %v428 = vlaneseq
    %v429 = vshrl.u32 %v428, 7
    %v430 = vsub.s32 0, %v429
    %v431 = vrot.slane %v426, %v430
    %v432 = vlaneseq
    %v433 = vshrl.u32 %v432, 7
    %v434 = vsub.s32 1, %v433
    %v435 = vrot.slane %v426, %v434
    %v436 = vlaneseq
    %v437 = vshrl.u32 %v436, 7
    %v438 = vsub.s32 2, %v437
    %v439 = vrot.slane %v426, %v438
    %v440 = vlaneseq
    %v441 = vshrl.u32 %v440, 7
    %v442 = vsub.s32 3, %v441
    %v443 = vrot.slane %v426, %v442
    %vm448 = vcmask 130048
    %v450 = vsel %vm448, %v33, 0
    %452 = vmatprep.subr.mxu0 %v35
    %453 = vmatpush1.msra.mxu0 %v34
    %454 = vmatprep.subr.mxu0 %v39
    %455 = vmatpush1.msra.mxu0 %v38
    %456 = vmatprep.subr.mxu0 %v43
    %457 = vmatpush1.msra.mxu0 %v42
    %458 = vmatprep.subr.mxu0 %v47
    %459 = vmatpush1.msra.mxu0 %v46
    %460 = vmatprep.subr.mxu0 %v51
    %461 = vmatpush1.msra.mxu0 %v50
    %462 = vmatprep.subr.mxu0 %v55
    %463 = vmatpush1.msra.mxu0 %v54
    %464 = vmatprep.subr.mxu0 %v59
    %465 = vmatpush1.msra.mxu0 %v58
    %466 = vmatprep.subr.mxu0 %v63
    %467 = vmatpush1.msra.mxu0 %v62
    %468 = vmatprep.subr.mxu0 %v67
    %469 = vmatpush1.msra.mxu0 %v66
    %470 = vmatprep.subr.mxu0 %v71
    %471 = vmatpush1.msra.mxu0 %v70
    %472 = vmatprep.subr.mxu0 %v75
    %473 = vmatpush1.msra.mxu0 %v74
    %474 = vmatprep.subr.mxu0 %v79
    %475 = vmatpush1.msra.mxu0 %v78
    %476 = vmatprep.subr.mxu0 %v83
    %477 = vmatpush1.msra.mxu0 %v82
    %478 = vmatprep.subr.mxu0 %v87
    %479 = vmatpush1.msra.mxu0 %v86
    %480 = vmatprep.subr.mxu0 %v91
    %481 = vmatpush1.msra.mxu0 %v90
    %482 = vmatprep.subr.mxu0 %v95
    %483 = vmatpush1.msra.mxu0 %v94
    %484 = vmatprep.subr.mxu0 %v99
    %485 = vmatpush1.msra.mxu0 %v98
    %486 = vmatprep.subr.mxu0 %v103
    %487 = vmatpush1.msra.mxu0 %v102
    %488 = vmatprep.subr.mxu0 %v107
    %489 = vmatpush1.msra.mxu0 %v106
    %490 = vmatprep.subr.mxu0 %v111
    %491 = vmatpush1.msra.mxu0 %v110
    %492 = vmatprep.subr.mxu0 %v115
    %493 = vmatpush1.msra.mxu0 %v114
    %494 = vmatprep.subr.mxu0 %v119
    %495 = vmatpush1.msra.mxu0 %v118
    %496 = vmatprep.subr.mxu0 %v123
    %497 = vmatpush1.msra.mxu0 %v122
    %498 = vmatprep.subr.mxu0 %v127
    %499 = vmatpush1.msra.mxu0 %v126
    %500 = vmatprep.subr.mxu0 %v131
    %501 = vmatpush1.msra.mxu0 %v130
    %502 = vmatprep.subr.mxu0 %v135
    %503 = vmatpush1.msra.mxu0 %v134
    %504 = vmatprep.subr.mxu0 %v139
    %505 = vmatpush1.msra.mxu0 %v138
    %506 = vmatprep.subr.mxu0 %v143
    %507 = vmatpush1.msra.mxu0 %v142
    %508 = vmatprep.subr.mxu0 %v147
    %509 = vmatpush1.msra.mxu0 %v146
    %510 = vmatprep.subr.mxu0 %v151
    %511 = vmatpush1.msra.mxu0 %v150
    %512 = vmatprep.subr.mxu0 %v155
    %513 = vmatpush1.msra.mxu0 %v154
    %514 = vmatprep.subr.mxu0 %v159
    %515 = vmatpush1.msra.mxu0 %v158
    %516 = vmatprep.mubr.f32.mxu0 %v28
    %517 = vmatmul.mubr.f32.gmra.mrb[0].mxu0 %v27
    %v518 = vpop.f32.mrb[0].mxu0
    %v519 = vadd.f32 %v431, %v518
    %v520 = vpop.f32.mrb[0].mxu0
    %v521 = vadd.f32 %v435, %v520
    %522 = vdwg.mxu0
    %523 = vmatprep.subr.mxu0 %v163
    %524 = vmatpush1.msra.mxu0 %v162
    %525 = vmatprep.subr.mxu0 %v167
    %526 = vmatpush1.msra.mxu0 %v166
    %527 = vmatprep.subr.mxu0 %v171
    %528 = vmatpush1.msra.mxu0 %v170
    %529 = vmatprep.subr.mxu0 %v175
    %530 = vmatpush1.msra.mxu0 %v174
    %531 = vmatprep.subr.mxu0 %v179
    %532 = vmatpush1.msra.mxu0 %v178
    %533 = vmatprep.subr.mxu0 %v183
    %534 = vmatpush1.msra.mxu0 %v182
    %535 = vmatprep.subr.mxu0 %v187
    %536 = vmatpush1.msra.mxu0 %v186
    %537 = vmatprep.subr.mxu0 %v191
    %538 = vmatpush1.msra.mxu0 %v190
    %539 = vmatprep.subr.mxu0 %v195
    %540 = vmatpush1.msra.mxu0 %v194
    %541 = vmatprep.subr.mxu0 %v199
    %542 = vmatpush1.msra.mxu0 %v198
    %543 = vmatprep.subr.mxu0 %v203
    %544 = vmatpush1.msra.mxu0 %v202
    %545 = vmatprep.subr.mxu0 %v207
    %546 = vmatpush1.msra.mxu0 %v206
    %547 = vmatprep.subr.mxu0 %v211
    %548 = vmatpush1.msra.mxu0 %v210
    %549 = vmatprep.subr.mxu0 %v215
    %550 = vmatpush1.msra.mxu0 %v214
    %551 = vmatprep.subr.mxu0 %v219
    %552 = vmatpush1.msra.mxu0 %v218
    %553 = vmatprep.subr.mxu0 %v223
    %554 = vmatpush1.msra.mxu0 %v222
    %555 = vmatprep.subr.mxu0 %v227
    %556 = vmatpush1.msra.mxu0 %v226
    %557 = vmatprep.subr.mxu0 %v231
    %558 = vmatpush1.msra.mxu0 %v230
    %559 = vmatprep.subr.mxu0 %v235
    %560 = vmatpush1.msra.mxu0 %v234
    %561 = vmatprep.subr.mxu0 %v239
    %562 = vmatpush1.msra.mxu0 %v238
    %563 = vmatprep.subr.mxu0 %v243
    %564 = vmatpush1.msra.mxu0 %v242
    %565 = vmatprep.subr.mxu0 %v247
    %566 = vmatpush1.msra.mxu0 %v246
    %567 = vmatprep.subr.mxu0 %v251
    %568 = vmatpush1.msra.mxu0 %v250
    %569 = vmatprep.subr.mxu0 %v255
    %570 = vmatpush1.msra.mxu0 %v254
    %571 = vmatprep.subr.mxu0 %v259
    %572 = vmatpush1.msra.mxu0 %v258
    %573 = vmatprep.subr.mxu0 %v263
    %574 = vmatpush1.msra.mxu0 %v262
    %575 = vmatprep.subr.mxu0 %v267
    %576 = vmatpush1.msra.mxu0 %v266
    %577 = vmatprep.subr.mxu0 %v271
    %578 = vmatpush1.msra.mxu0 %v270
    %579 = vmatprep.subr.mxu0 %v275
    %580 = vmatpush1.msra.mxu0 %v274
    %581 = vmatprep.subr.mxu0 %v279
    %582 = vmatpush1.msra.mxu0 %v278
    %583 = vmatprep.subr.mxu0 %v283
    %584 = vmatpush1.msra.mxu0 %v282
    %585 = vmatprep.subr.mxu0 %v287
    %586 = vmatpush1.msra.mxu0 %v286
    %587 = vmatprep.mubr.f32.mxu0 %v30
    %588 = vmatmul.mubr.f32.gmra.mrb[0].mxu0 %v29
    %v589 = vpop.f32.mrb[0].mxu0
    %v590 = vadd.f32 %v519, %v589
    %v591 = vpop.f32.mrb[0].mxu0
    %v592 = vadd.f32 %v521, %v591
    %593 = vdwg.mxu0
    %594 = vmatprep.subr.mxu0 %v291
    %595 = vmatpush1.msra.mxu0 %v290
    %596 = vmatprep.subr.mxu0 %v295
    %597 = vmatpush1.msra.mxu0 %v294
    %598 = vmatprep.subr.mxu0 %v299
    %599 = vmatpush1.msra.mxu0 %v298
    %600 = vmatprep.subr.mxu0 %v303
    %601 = vmatpush1.msra.mxu0 %v302
    %602 = vmatprep.subr.mxu0 %v307
    %603 = vmatpush1.msra.mxu0 %v306
    %604 = vmatprep.subr.mxu0 %v311
    %605 = vmatpush1.msra.mxu0 %v310
    %606 = vmatprep.subr.mxu0 %v315
    %607 = vmatpush1.msra.mxu0 %v314
    %608 = vmatprep.subr.mxu0 %v319
    %609 = vmatpush1.msra.mxu0 %v318
    %610 = vmatprep.subr.mxu0 %v323
    %611 = vmatpush1.msra.mxu0 %v322
    %612 = vmatprep.subr.mxu0 %v327
    %613 = vmatpush1.msra.mxu0 %v326
    %614 = vmatprep.subr.mxu0 %v331
    %615 = vmatpush1.msra.mxu0 %v330
    %616 = vmatprep.subr.mxu0 %v335
    %617 = vmatpush1.msra.mxu0 %v334
    %618 = vmatprep.subr.mxu0 %v339
    %619 = vmatpush1.msra.mxu0 %v338
    %620 = vmatprep.subr.mxu0 %v343
    %621 = vmatpush1.msra.mxu0 %v342
    %622 = vmatprep.subr.mxu0 %v347
    %623 = vmatpush1.msra.mxu0 %v346
    %624 = vmatprep.subr.mxu0 %v351
    %625 = vmatpush1.msra.mxu0 %v350
    %626 = vmatprep.subr.mxu0 %v355
    %627 = vmatpush1.msra.mxu0 %v354
    %628 = vmatprep.subr.mxu0 %v359
    %629 = vmatpush1.msra.mxu0 %v358
    %630 = vmatprep.subr.mxu0 %v363
    %631 = vmatpush1.msra.mxu0 %v362
    %632 = vmatprep.subr.mxu0 %v367
    %633 = vmatpush1.msra.mxu0 %v366
    %634 = vmatprep.subr.mxu0 %v371
    %635 = vmatpush1.msra.mxu0 %v370
    %636 = vmatprep.subr.mxu0 %v375
    %637 = vmatpush1.msra.mxu0 %v374
    %638 = vmatprep.subr.mxu0 %v379
    %639 = vmatpush1.msra.mxu0 %v378
    %640 = vmatprep.subr.mxu0 %v383
    %641 = vmatpush1.msra.mxu0 %v382
    %642 = vmatprep.subr.mxu0 %v387
    %643 = vmatpush1.msra.mxu0 %v386
    %644 = vmatprep.subr.mxu0 %v391
    %645 = vmatpush1.msra.mxu0 %v390
    %646 = vmatprep.subr.mxu0 %v395
    %647 = vmatpush1.msra.mxu0 %v394
    %648 = vmatprep.subr.mxu0 %v399
    %649 = vmatpush1.msra.mxu0 %v398
    %650 = vmatprep.subr.mxu0 %v403
    %651 = vmatpush1.msra.mxu0 %v402
    %652 = vmatprep.subr.mxu0 %v407
    %653 = vmatpush1.msra.mxu0 %v406
    %654 = vmatprep.subr.mxu0 %v411
    %655 = vmatpush1.msra.mxu0 %v410
    %656 = vmatprep.subr.mxu0 %v415
    %657 = vmatpush1.msra.mxu0 %v414
    %658 = vmatprep.mubr.f32.mxu0 %v32
    %659 = vmatmul.mubr.f32.gmra.mrb[0].mxu0 %v31
    %v660 = vpop.f32.mrb[0].mxu0
    %v661 = vadd.f32 %v590, %v660
    %v662 = vpop.f32.mrb[0].mxu0
    %v663 = vadd.f32 %v592, %v662
    %664 = vdwg.mxu0
    %665 = vmatprep.subr.mxu0 %v419
    %666 = vmatpush1.msra.mxu0 %v418
    %667 = vmatprep.subr.mxu0 %v423
    %668 = vmatpush1.msra.mxu0 %v422
    %669 = vmatprep.subr.mxu0 0.0
    %670 = vmatpush1.msra.mxu0 0.0
    %671 = vmatprep.subr.mxu0 0.0
    %672 = vmatpush1.msra.mxu0 0.0
    %673 = vmatprep.subr.mxu0 0.0
    %674 = vmatpush1.msra.mxu0 0.0
    %675 = vmatprep.subr.mxu0 0.0
    %676 = vmatpush1.msra.mxu0 0.0
    %677 = vmatprep.subr.mxu0 0.0
    %678 = vmatpush1.msra.mxu0 0.0
    %679 = vmatprep.subr.mxu0 0.0
    %680 = vmatpush1.msra.mxu0 0.0
    %681 = vmatprep.subr.mxu0 0.0
    %682 = vmatpush1.msra.mxu0 0.0
    %683 = vmatprep.subr.mxu0 0.0
    %684 = vmatpush1.msra.mxu0 0.0
    %685 = vmatprep.subr.mxu0 0.0
    %686 = vmatpush1.msra.mxu0 0.0
    %687 = vmatprep.subr.mxu0 0.0
    %688 = vmatpush1.msra.mxu0 0.0
    %689 = vmatprep.subr.mxu0 0.0
    %690 = vmatpush1.msra.mxu0 0.0
    %691 = vmatprep.subr.mxu0 0.0
    %692 = vmatpush1.msra.mxu0 0.0
    %693 = vmatprep.subr.mxu0 0.0
    %694 = vmatpush1.msra.mxu0 0.0
    %695 = vmatprep.subr.mxu0 0.0
    %696 = vmatpush1.msra.mxu0 0.0
    %697 = vmatprep.subr.mxu0 0.0
    %698 = vmatpush1.msra.mxu0 0.0
    %699 = vmatprep.subr.mxu0 0.0
    %700 = vmatpush1.msra.mxu0 0.0
    %701 = vmatprep.subr.mxu0 0.0
    %702 = vmatpush1.msra.mxu0 0.0
    %703 = vmatprep.subr.mxu0 0.0
    %704 = vmatpush1.msra.mxu0 0.0
    %705 = vmatprep.subr.mxu0 0.0
    %706 = vmatpush1.msra.mxu0 0.0
    %707 = vmatprep.subr.mxu0 0.0
    %708 = vmatpush1.msra.mxu0 0.0
    %709 = vmatprep.subr.mxu0 0.0
    %710 = vmatpush1.msra.mxu0 0.0
    %711 = vmatprep.subr.mxu0 0.0
    %712 = vmatpush1.msra.mxu0 0.0
    %713 = vmatprep.subr.mxu0 0.0
    %714 = vmatpush1.msra.mxu0 0.0
    %715 = vmatprep.subr.mxu0 0.0
    %716 = vmatpush1.msra.mxu0 0.0
    %717 = vmatprep.subr.mxu0 0.0
    %718 = vmatpush1.msra.mxu0 0.0
    %719 = vmatprep.subr.mxu0 0.0
    %720 = vmatpush1.msra.mxu0 0.0
    %721 = vmatprep.subr.mxu0 0.0
    %722 = vmatpush1.msra.mxu0 0.0
    %723 = vmatprep.subr.mxu0 0.0
    %724 = vmatpush1.msra.mxu0 0.0
    %725 = vmatprep.subr.mxu0 0.0
    %726 = vmatpush1.msra.mxu0 0.0
    %727 = vmatprep.subr.mxu0 0.0
    %728 = vmatpush1.msra.mxu0 0.0
    %729 = vmatprep.mubr.f32.mxu0 0.0
    %730 = vmatmul.mubr.f32.gmra.mrb[0].mxu0 %v450
    %v731 = vpop.f32.mrb[0].mxu0
    %v732 = vadd.f32 %v661, %v731
    %v733 = vpop.f32.mrb[0].mxu0
    %v734 = vadd.f32 %v663, %v733
    %735 = vdwg.mxu0
    %736 = vmatprep.subr.mxu0 %v37
    %737 = vmatpush1.msra.mxu0 %v36
    %738 = vmatprep.subr.mxu0 %v41
    %739 = vmatpush1.msra.mxu0 %v40
    %740 = vmatprep.subr.mxu0 %v45
    %741 = vmatpush1.msra.mxu0 %v44
    %742 = vmatprep.subr.mxu0 %v49
    %743 = vmatpush1.msra.mxu0 %v48
    %744 = vmatprep.subr.mxu0 %v53
    %745 = vmatpush1.msra.mxu0 %v52
    %746 = vmatprep.subr.mxu0 %v57
    %747 = vmatpush1.msra.mxu0 %v56
    %748 = vmatprep.subr.mxu0 %v61
    %749 = vmatpush1.msra.mxu0 %v60
    %750 = vmatprep.subr.mxu0 %v65
    %751 = vmatpush1.msra.mxu0 %v64
    %752 = vmatprep.subr.mxu0 %v69
    %753 = vmatpush1.msra.mxu0 %v68
    %754 = vmatprep.subr.mxu0 %v73
    %755 = vmatpush1.msra.mxu0 %v72
    %756 = vmatprep.subr.mxu0 %v77
    %757 = vmatpush1.msra.mxu0 %v76
    %758 = vmatprep.subr.mxu0 %v81
    %759 = vmatpush1.msra.mxu0 %v80
    %760 = vmatprep.subr.mxu0 %v85
    %761 = vmatpush1.msra.mxu0 %v84
    %762 = vmatprep.subr.mxu0 %v89
    %763 = vmatpush1.msra.mxu0 %v88
    %764 = vmatprep.subr.mxu0 %v93
    %765 = vmatpush1.msra.mxu0 %v92
    %766 = vmatprep.subr.mxu0 %v97
    %767 = vmatpush1.msra.mxu0 %v96
    %768 = vmatprep.subr.mxu0 %v101
    %769 = vmatpush1.msra.mxu0 %v100
    %770 = vmatprep.subr.mxu0 %v105
    %771 = vmatpush1.msra.mxu0 %v104
    %772 = vmatprep.subr.mxu0 %v109
    %773 = vmatpush1.msra.mxu0 %v108
    %774 = vmatprep.subr.mxu0 %v113
    %775 = vmatpush1.msra.mxu0 %v112
    %776 = vmatprep.subr.mxu0 %v117
    %777 = vmatpush1.msra.mxu0 %v116
    %778 = vmatprep.subr.mxu0 %v121
    %779 = vmatpush1.msra.mxu0 %v120
    %780 = vmatprep.subr.mxu0 %v125
    %781 = vmatpush1.msra.mxu0 %v124
    %782 = vmatprep.subr.mxu0 %v129
    %783 = vmatpush1.msra.mxu0 %v128
    %784 = vmatprep.subr.mxu0 %v133
    %785 = vmatpush1.msra.mxu0 %v132
    %786 = vmatprep.subr.mxu0 %v137
    %787 = vmatpush1.msra.mxu0 %v136
    %788 = vmatprep.subr.mxu0 %v141
    %789 = vmatpush1.msra.mxu0 %v140
    %790 = vmatprep.subr.mxu0 %v145
    %791 = vmatpush1.msra.mxu0 %v144
    %792 = vmatprep.subr.mxu0 %v149
    %793 = vmatpush1.msra.mxu0 %v148
    %794 = vmatprep.subr.mxu0 %v153
    %795 = vmatpush1.msra.mxu0 %v152
    %796 = vmatprep.subr.mxu0 %v157
    %797 = vmatpush1.msra.mxu0 %v156
    %798 = vmatprep.subr.mxu0 %v161
    %799 = vmatpush1.msra.mxu0 %v160
    %800 = vmatprep.mubr.f32.mxu0 %v28
    %801 = vmatmul.mubr.f32.gmra.mrb[0].mxu0 %v27
    %v802 = vpop.f32.mrb[0].mxu0
    %v803 = vadd.f32 %v439, %v802
    %v804 = vpop.f32.mrb[0].mxu0
    %v805 = vadd.f32 %v443, %v804
    %806 = vdwg.mxu0
    %807 = vmatprep.subr.mxu0 %v165
    %808 = vmatpush1.msra.mxu0 %v164
    %809 = vmatprep.subr.mxu0 %v169
    %810 = vmatpush1.msra.mxu0 %v168
    %811 = vmatprep.subr.mxu0 %v173
    %812 = vmatpush1.msra.mxu0 %v172
    %813 = vmatprep.subr.mxu0 %v177
    %814 = vmatpush1.msra.mxu0 %v176
    %815 = vmatprep.subr.mxu0 %v181
    %816 = vmatpush1.msra.mxu0 %v180
    %817 = vmatprep.subr.mxu0 %v185
    %818 = vmatpush1.msra.mxu0 %v184
    %819 = vmatprep.subr.mxu0 %v189
    %820 = vmatpush1.msra.mxu0 %v188
    %821 = vmatprep.subr.mxu0 %v193
    %822 = vmatpush1.msra.mxu0 %v192
    %823 = vmatprep.subr.mxu0 %v197
    %824 = vmatpush1.msra.mxu0 %v196
    %825 = vmatprep.subr.mxu0 %v201
    %826 = vmatpush1.msra.mxu0 %v200
    %827 = vmatprep.subr.mxu0 %v205
    %828 = vmatpush1.msra.mxu0 %v204
    %829 = vmatprep.subr.mxu0 %v209
    %830 = vmatpush1.msra.mxu0 %v208
    %831 = vmatprep.subr.mxu0 %v213
    %832 = vmatpush1.msra.mxu0 %v212
    %833 = vmatprep.subr.mxu0 %v217
    %834 = vmatpush1.msra.mxu0 %v216
    %835 = vmatprep.subr.mxu0 %v221
    %836 = vmatpush1.msra.mxu0 %v220
    %837 = vmatprep.subr.mxu0 %v225
    %838 = vmatpush1.msra.mxu0 %v224
    %839 = vmatprep.subr.mxu0 %v229
    %840 = vmatpush1.msra.mxu0 %v228
    %841 = vmatprep.subr.mxu0 %v233
    %842 = vmatpush1.msra.mxu0 %v232
    %843 = vmatprep.subr.mxu0 %v237
    %844 = vmatpush1.msra.mxu0 %v236
    %845 = vmatprep.subr.mxu0 %v241
    %846 = vmatpush1.msra.mxu0 %v240
    %847 = vmatprep.subr.mxu0 %v245
    %848 = vmatpush1.msra.mxu0 %v244
    %849 = vmatprep.subr.mxu0 %v249
    %850 = vmatpush1.msra.mxu0 %v248
    %851 = vmatprep.subr.mxu0 %v253
    %852 = vmatpush1.msra.mxu0 %v252
    %853 = vmatprep.subr.mxu0 %v257
    %854 = vmatpush1.msra.mxu0 %v256
    %855 = vmatprep.subr.mxu0 %v261
    %856 = vmatpush1.msra.mxu0 %v260
    %857 = vmatprep.subr.mxu0 %v265
    %858 = vmatpush1.msra.mxu0 %v264
    %859 = vmatprep.subr.mxu0 %v269
    %860 = vmatpush1.msra.mxu0 %v268
    %861 = vmatprep.subr.mxu0 %v273
    %862 = vmatpush1.msra.mxu0 %v272
    %863 = vmatprep.subr.mxu0 %v277
    %864 = vmatpush1.msra.mxu0 %v276
    %865 = vmatprep.subr.mxu0 %v281
    %866 = vmatpush1.msra.mxu0 %v280
    %867 = vmatprep.subr.mxu0 %v285
    %868 = vmatpush1.msra.mxu0 %v284
    %869 = vmatprep.subr.mxu0 %v289
    %870 = vmatpush1.msra.mxu0 %v288
    %871 = vmatprep.mubr.f32.mxu0 %v30
    %872 = vmatmul.mubr.f32.gmra.mrb[0].mxu0 %v29
    %v873 = vpop.f32.mrb[0].mxu0
    %v874 = vadd.f32 %v803, %v873
    %v875 = vpop.f32.mrb[0].mxu0
    %v876 = vadd.f32 %v805, %v875
    %877 = vdwg.mxu0
    %878 = vmatprep.subr.mxu0 %v293
    %879 = vmatpush1.msra.mxu0 %v292
    %880 = vmatprep.subr.mxu0 %v297
    %881 = vmatpush1.msra.mxu0 %v296
    %882 = vmatprep.subr.mxu0 %v301
    %883 = vmatpush1.msra.mxu0 %v300
    %884 = vmatprep.subr.mxu0 %v305
    %885 = vmatpush1.msra.mxu0 %v304
    %886 = vmatprep.subr.mxu0 %v309
    %887 = vmatpush1.msra.mxu0 %v308
    %888 = vmatprep.subr.mxu0 %v313
    %889 = vmatpush1.msra.mxu0 %v312
    %890 = vmatprep.subr.mxu0 %v317
    %891 = vmatpush1.msra.mxu0 %v316
    %892 = vmatprep.subr.mxu0 %v321
    %893 = vmatpush1.msra.mxu0 %v320
    %894 = vmatprep.subr.mxu0 %v325
    %895 = vmatpush1.msra.mxu0 %v324
    %896 = vmatprep.subr.mxu0 %v329
    %897 = vmatpush1.msra.mxu0 %v328
    %898 = vmatprep.subr.mxu0 %v333
    %899 = vmatpush1.msra.mxu0 %v332
    %900 = vmatprep.subr.mxu0 %v337
    %901 = vmatpush1.msra.mxu0 %v336
    %902 = vmatprep.subr.mxu0 %v341
    %903 = vmatpush1.msra.mxu0 %v340
    %904 = vmatprep.subr.mxu0 %v345
    %905 = vmatpush1.msra.mxu0 %v344
    %906 = vmatprep.subr.mxu0 %v349
    %907 = vmatpush1.msra.mxu0 %v348
    %908 = vmatprep.subr.mxu0 %v353
    %909 = vmatpush1.msra.mxu0 %v352
    %910 = vmatprep.subr.mxu0 %v357
    %911 = vmatpush1.msra.mxu0 %v356
    %912 = vmatprep.subr.mxu0 %v361
    %913 = vmatpush1.msra.mxu0 %v360
    %914 = vmatprep.subr.mxu0 %v365
    %915 = vmatpush1.msra.mxu0 %v364
    %916 = vmatprep.subr.mxu0 %v369
    %917 = vmatpush1.msra.mxu0 %v368
    %918 = vmatprep.subr.mxu0 %v373
    %919 = vmatpush1.msra.mxu0 %v372
    %920 = vmatprep.subr.mxu0 %v377
    %921 = vmatpush1.msra.mxu0 %v376
    %922 = vmatprep.subr.mxu0 %v381
    %923 = vmatpush1.msra.mxu0 %v380
    %924 = vmatprep.subr.mxu0 %v385
    %925 = vmatpush1.msra.mxu0 %v384
    %926 = vmatprep.subr.mxu0 %v389
    %927 = vmatpush1.msra.mxu0 %v388
    %928 = vmatprep.subr.mxu0 %v393
    %929 = vmatpush1.msra.mxu0 %v392
    %930 = vmatprep.subr.mxu0 %v397
    %931 = vmatpush1.msra.mxu0 %v396
    %932 = vmatprep.subr.mxu0 %v401
    %933 = vmatpush1.msra.mxu0 %v400
    %934 = vmatprep.subr.mxu0 %v405
    %935 = vmatpush1.msra.mxu0 %v404
    %936 = vmatprep.subr.mxu0 %v409
    %937 = vmatpush1.msra.mxu0 %v408
    %938 = vmatprep.subr.mxu0 %v413
    %939 = vmatpush1.msra.mxu0 %v412
    %940 = vmatprep.subr.mxu0 %v417
    %941 = vmatpush1.msra.mxu0 %v416
    %942 = vmatprep.mubr.f32.mxu0 %v32
    %943 = vmatmul.mubr.f32.gmra.mrb[0].mxu0 %v31
    %v944 = vpop.f32.mrb[0].mxu0
    %v945 = vadd.f32 %v874, %v944
    %v946 = vpop.f32.mrb[0].mxu0
    %v947 = vadd.f32 %v876, %v946
    %948 = vdwg.mxu0
    %949 = vmatprep.subr.mxu0 %v421
    %950 = vmatpush1.msra.mxu0 %v420
    %951 = vmatprep.subr.mxu0 %v425
    %952 = vmatpush1.msra.mxu0 %v424
    %953 = vmatprep.subr.mxu0 0.0
    %954 = vmatpush1.msra.mxu0 0.0
    %955 = vmatprep.subr.mxu0 0.0
    %956 = vmatpush1.msra.mxu0 0.0
    %957 = vmatprep.subr.mxu0 0.0
    %958 = vmatpush1.msra.mxu0 0.0
    %959 = vmatprep.subr.mxu0 0.0
    %960 = vmatpush1.msra.mxu0 0.0
    %961 = vmatprep.subr.mxu0 0.0
    %962 = vmatpush1.msra.mxu0 0.0
    %963 = vmatprep.subr.mxu0 0.0
    %964 = vmatpush1.msra.mxu0 0.0
    %965 = vmatprep.subr.mxu0 0.0
    %966 = vmatpush1.msra.mxu0 0.0
    %967 = vmatprep.subr.mxu0 0.0
    %968 = vmatpush1.msra.mxu0 0.0
    %969 = vmatprep.subr.mxu0 0.0
    %970 = vmatpush1.msra.mxu0 0.0
    %971 = vmatprep.subr.mxu0 0.0
    %972 = vmatpush1.msra.mxu0 0.0
    %973 = vmatprep.subr.mxu0 0.0
    %974 = vmatpush1.msra.mxu0 0.0
    %975 = vmatprep.subr.mxu0 0.0
    %976 = vmatpush1.msra.mxu0 0.0
    %977 = vmatprep.subr.mxu0 0.0
    %978 = vmatpush1.msra.mxu0 0.0
    %979 = vmatprep.subr.mxu0 0.0
    %980 = vmatpush1.msra.mxu0 0.0
    %981 = vmatprep.subr.mxu0 0.0
    %982 = vmatpush1.msra.mxu0 0.0
    %983 = vmatprep.subr.mxu0 0.0
    %984 = vmatpush1.msra.mxu0 0.0
    %985 = vmatprep.subr.mxu0 0.0
    %986 = vmatpush1.msra.mxu0 0.0
    %987 = vmatprep.subr.mxu0 0.0
    %988 = vmatpush1.msra.mxu0 0.0
    %989 = vmatprep.subr.mxu0 0.0
    %990 = vmatpush1.msra.mxu0 0.0
    %991 = vmatprep.subr.mxu0 0.0
    %992 = vmatpush1.msra.mxu0 0.0
    %993 = vmatprep.subr.mxu0 0.0
    %994 = vmatpush1.msra.mxu0 0.0
    %995 = vmatprep.subr.mxu0 0.0
    %996 = vmatpush1.msra.mxu0 0.0
    %997 = vmatprep.subr.mxu0 0.0
    %998 = vmatpush1.msra.mxu0 0.0
    %999 = vmatprep.subr.mxu0 0.0
    %1000 = vmatpush1.msra.mxu0 0.0
    %1001 = vmatprep.subr.mxu0 0.0
    %1002 = vmatpush1.msra.mxu0 0.0
    %1003 = vmatprep.subr.mxu0 0.0
    %1004 = vmatpush1.msra.mxu0 0.0
    %1005 = vmatprep.subr.mxu0 0.0
    %1006 = vmatpush1.msra.mxu0 0.0
    %1007 = vmatprep.subr.mxu0 0.0
    %1008 = vmatpush1.msra.mxu0 0.0
    %1009 = vmatprep.subr.mxu0 0.0
    %1010 = vmatpush1.msra.mxu0 0.0
    %1011 = vmatprep.subr.mxu0 0.0
    %1012 = vmatpush1.msra.mxu0 0.0
    %1013 = vmatprep.mubr.f32.mxu0 0.0
    %1014 = vmatmul.mubr.f32.gmra.mrb[0].mxu0 %v450
    %v1015 = vpop.f32.mrb[0].mxu0
    %v1016 = vadd.f32 %v945, %v1015
    %v1017 = vpop.f32.mrb[0].mxu0
    %v1018 = vadd.f32 %v947, %v1017
    %1019 = vdwg.mxu0
    %v1020 = vmax.f32 %v732, 0.0
    %v1021 = vmax.f32 %v734, 0.0
    %v1022 = vmax.f32 %v1016, 0.0
    %v1023 = vmax.f32 %v1018, 0.0
    %v1024 = vld [vmem:[%s3] sm:$0xff]
    %v1025 = vld [vmem:[%s3 + $0x8] sm:$0xff]
    %v1026 = vld [vmem:[%s3 + $0x10] sm:$0xff]
    %v1027 = vld [vmem:[%s3 + $0x18] sm:$0xff]
    %v1028 = vld [vmem:[%s3 + $0x20] sm:$0xff]
    %v1029 = vld [vmem:[%s3 + $0x28] sm:$0xff]
    %v1030 = vld [vmem:[%s3 + $0x30] sm:$0xff]
    %v1031 = vld [vmem:[%s3 + $0x38] sm:$0xff]
    %v1032 = vld [vmem:[%s3 + $0x40] sm:$0xff]
    %v1033 = vld [vmem:[%s3 + $0x48] sm:$0xff]
    %v1034 = vld [vmem:[%s3 + $0x50] sm:$0xff]
    %v1035 = vld [vmem:[%s3 + $0x58] sm:$0xff]
    %v1036 = vld [vmem:[%s3 + $0x60] sm:$0xff]
    %v1037 = vld [vmem:[%s3 + $0x68] sm:$0xff]
    %v1038 = vld [vmem:[%s3 + $0x70] sm:$0xff]
    %v1039 = vld [vmem:[%s3 + $0x78] sm:$0xff]
    %v1040 = vld [vmem:[%s3 + $0x80] sm:$0xff]
    %v1041 = vld [vmem:[%s3 + $0x88] sm:$0xff]
    %v1042 = vld [vmem:[%s3 + $0x90] sm:$0xff]
    %v1043 = vld [vmem:[%s3 + $0x98] sm:$0xff]
    %v1044 = vld [vmem:[%s3 + $0xa0] sm:$0xff]
    %v1045 = vld [vmem:[%s3 + $0xa8] sm:$0xff]
    %v1046 = vld [vmem:[%s3 + $0xb0] sm:$0xff]
    %v1047 = vld [vmem:[%s3 + $0xb8] sm:$0xff]
    %v1048 = vld [vmem:[%s3 + $0xc0] sm:$0xff]
    %v1049 = vld [vmem:[%s3 + $0xc8] sm:$0xff]
    %v1050 = vld [vmem:[%s3 + $0xd0] sm:$0xff]
    %v1051 = vld [vmem:[%s3 + $0xd8] sm:$0xff]
    %v1052 = vld [vmem:[%s3 + $0xe0] sm:$0xff]
    %v1053 = vld [vmem:[%s3 + $0xe8] sm:$0xff]
    %v1054 = vld [vmem:[%s3 + $0xf0] sm:$0xff]
    %v1055 = vld [vmem:[%s3 + $0xf8] sm:$0xff]
    %v1056 = vld [vmem:[%s3 + $0x100] sm:$0xff]
    %v1057 = vld [vmem:[%s3 + $0x108] sm:$0xff]
    %v1058 = vld [vmem:[%s3 + $0x110] sm:$0xff]
    %v1059 = vld [vmem:[%s3 + $0x118] sm:$0xff]
    %v1060 = vld [vmem:[%s3 + $0x120] sm:$0xff]
    %v1061 = vld [vmem:[%s3 + $0x128] sm:$0xff]
    %v1062 = vld [vmem:[%s3 + $0x130] sm:$0xff]
    %v1063 = vld [vmem:[%s3 + $0x138] sm:$0xff]
    %v1064 = vld [vmem:[%s3 + $0x140] sm:$0xff]
    %v1065 = vld [vmem:[%s3 + $0x148] sm:$0xff]
    %v1066 = vld [vmem:[%s3 + $0x150] sm:$0xff]
    %v1067 = vld [vmem:[%s3 + $0x158] sm:$0xff]
    %v1068 = vld [vmem:[%s3 + $0x160] sm:$0xff]
    %v1069 = vld [vmem:[%s3 + $0x168] sm:$0xff]
    %v1070 = vld [vmem:[%s3 + $0x170] sm:$0xff]
    %v1071 = vld [vmem:[%s3 + $0x178] sm:$0xff]
    %v1072 = vld [vmem:[%s3 + $0x180] sm:$0xff]
    %v1073 = vld [vmem:[%s3 + $0x188] sm:$0xff]
    %v1074 = vld [vmem:[%s3 + $0x190] sm:$0xff]
    %v1075 = vld [vmem:[%s3 + $0x198] sm:$0xff]
    %v1076 = vld [vmem:[%s3 + $0x1a0] sm:$0xff]
    %v1077 = vld [vmem:[%s3 + $0x1a8] sm:$0xff]
    %v1078 = vld [vmem:[%s3 + $0x1b0] sm:$0xff]
    %v1079 = vld [vmem:[%s3 + $0x1b8] sm:$0xff]
    %v1080 = vld [vmem:[%s3 + $0x1c0] sm:$0xff]
    %v1081 = vld [vmem:[%s3 + $0x1c8] sm:$0xff]
    %v1082 = vld [vmem:[%s3 + $0x1d0] sm:$0xff]
    %v1083 = vld [vmem:[%s3 + $0x1d8] sm:$0xff]
    %v1084 = vld [vmem:[%s3 + $0x1e0] sm:$0xff]
    %v1085 = vld [vmem:[%s3 + $0x1e8] sm:$0xff]
    %v1086 = vld [vmem:[%s3 + $0x1f0] sm:$0xff]
    %v1087 = vld [vmem:[%s3 + $0x1f8] sm:$0xff]
    %v1088 = vld [vmem:[%s3 + $0x200] sm:$0xff]
    %v1089 = vld [vmem:[%s3 + $0x208] sm:$0xff]
    %v1090 = vld [vmem:[%s3 + $0x210] sm:$0xff]
    %v1091 = vld [vmem:[%s3 + $0x218] sm:$0xff]
    %v1092 = vld [vmem:[%s3 + $0x220] sm:$0xff]
    %v1093 = vld [vmem:[%s3 + $0x228] sm:$0xff]
    %v1094 = vld [vmem:[%s3 + $0x230] sm:$0xff]
    %v1095 = vld [vmem:[%s3 + $0x238] sm:$0xff]
    %v1096 = vld [vmem:[%s3 + $0x240] sm:$0xff]
    %v1097 = vld [vmem:[%s3 + $0x248] sm:$0xff]
    %v1098 = vld [vmem:[%s3 + $0x250] sm:$0xff]
    %v1099 = vld [vmem:[%s3 + $0x258] sm:$0xff]
    %v1100 = vld [vmem:[%s3 + $0x260] sm:$0xff]
    %v1101 = vld [vmem:[%s3 + $0x268] sm:$0xff]
    %v1102 = vld [vmem:[%s3 + $0x270] sm:$0xff]
    %v1103 = vld [vmem:[%s3 + $0x278] sm:$0xff]
    %v1104 = vld [vmem:[%s3 + $0x280] sm:$0xff]
    %v1105 = vld [vmem:[%s3 + $0x288] sm:$0xff]
    %v1106 = vld [vmem:[%s3 + $0x290] sm:$0xff]
    %v1107 = vld [vmem:[%s3 + $0x298] sm:$0xff]
    %v1108 = vld [vmem:[%s3 + $0x2a0] sm:$0xff]
    %v1109 = vld [vmem:[%s3 + $0x2a8] sm:$0xff]
    %v1110 = vld [vmem:[%s3 + $0x2b0] sm:$0xff]
    %v1111 = vld [vmem:[%s3 + $0x2b8] sm:$0xff]
    %v1112 = vld [vmem:[%s3 + $0x2c0] sm:$0xff]
    %v1113 = vld [vmem:[%s3 + $0x2c8] sm:$0xff]
    %v1114 = vld [vmem:[%s3 + $0x2d0] sm:$0xff]
    %v1115 = vld [vmem:[%s3 + $0x2d8] sm:$0xff]
    %v1116 = vld [vmem:[%s3 + $0x2e0] sm:$0xff]
    %v1117 = vld [vmem:[%s3 + $0x2e8] sm:$0xff]
    %v1118 = vld [vmem:[%s3 + $0x2f0] sm:$0xff]
    %v1119 = vld [vmem:[%s3 + $0x2f8] sm:$0xff]
    %v1120 = vld [vmem:[%s3 + $0x300] sm:$0xff]
    %v1121 = vld [vmem:[%s3 + $0x308] sm:$0xff]
    %v1122 = vld [vmem:[%s3 + $0x310] sm:$0xff]
    %v1123 = vld [vmem:[%s3 + $0x318] sm:$0xff]
    %v1124 = vld [vmem:[%s3 + $0x320] sm:$0xff]
    %v1125 = vld [vmem:[%s3 + $0x328] sm:$0xff]
    %v1126 = vld [vmem:[%s3 + $0x330] sm:$0xff]
    %v1127 = vld [vmem:[%s3 + $0x338] sm:$0xff]
    %v1128 = vld [vmem:[%s3 + $0x340] sm:$0xff]
    %v1129 = vld [vmem:[%s3 + $0x348] sm:$0xff]
    %v1130 = vld [vmem:[%s3 + $0x350] sm:$0xff]
    %v1131 = vld [vmem:[%s3 + $0x358] sm:$0xff]
    %v1132 = vld [vmem:[%s3 + $0x360] sm:$0xff]
    %v1133 = vld [vmem:[%s3 + $0x368] sm:$0xff]
    %v1134 = vld [vmem:[%s3 + $0x370] sm:$0xff]
    %v1135 = vld [vmem:[%s3 + $0x378] sm:$0xff]
    %v1136 = vld [vmem:[%s3 + $0x380] sm:$0xff]
    %v1137 = vld [vmem:[%s3 + $0x388] sm:$0xff]
    %v1138 = vld [vmem:[%s3 + $0x390] sm:$0xff]
    %v1139 = vld [vmem:[%s3 + $0x398] sm:$0xff]
    %v1140 = vld [vmem:[%s3 + $0x3a0] sm:$0xff]
    %v1141 = vld [vmem:[%s3 + $0x3a8] sm:$0xff]
    %v1142 = vld [vmem:[%s3 + $0x3b0] sm:$0xff]
    %v1143 = vld [vmem:[%s3 + $0x3b8] sm:$0xff]
    %v1144 = vld [vmem:[%s3 + $0x3c0] sm:$0xff]
    %v1145 = vld [vmem:[%s3 + $0x3c8] sm:$0xff]
    %v1146 = vld [vmem:[%s3 + $0x3d0] sm:$0xff]
    %v1147 = vld [vmem:[%s3 + $0x3d8] sm:$0xff]
    %v1148 = vld [vmem:[%s3 + $0x3e0] sm:$0xff]
    %v1149 = vld [vmem:[%s3 + $0x3e8] sm:$0xff]
    %v1150 = vld [vmem:[%s3 + $0x3f0] sm:$0xff]
    %v1151 = vld [vmem:[%s3 + $0x3f8] sm:$0xff]
    %v1152 = vld [vmem:[%s3 + $0x400] sm:$0xff]
    %v1153 = vld [vmem:[%s3 + $0x408] sm:$0xff]
    %v1154 = vld [vmem:[%s3 + $0x410] sm:$0xff]
    %v1155 = vld [vmem:[%s3 + $0x418] sm:$0xff]
    %v1156 = vld [vmem:[%s3 + $0x420] sm:$0xff]
    %v1157 = vld [vmem:[%s3 + $0x428] sm:$0xff]
    %v1158 = vld [vmem:[%s3 + $0x430] sm:$0xff]
    %v1159 = vld [vmem:[%s3 + $0x438] sm:$0xff]
    %v1160 = vld [vmem:[%s3 + $0x440] sm:$0xff]
    %v1161 = vld [vmem:[%s3 + $0x448] sm:$0xff]
    %v1162 = vld [vmem:[%s3 + $0x450] sm:$0xff]
    %v1163 = vld [vmem:[%s3 + $0x458] sm:$0xff]
    %v1164 = vld [vmem:[%s3 + $0x460] sm:$0xff]
    %v1165 = vld [vmem:[%s3 + $0x468] sm:$0xff]
    %v1166 = vld [vmem:[%s3 + $0x470] sm:$0xff]
    %v1167 = vld [vmem:[%s3 + $0x478] sm:$0xff]
    %v1168 = vld [vmem:[%s3 + $0x480] sm:$0xff]
    %v1169 = vld [vmem:[%s3 + $0x488] sm:$0xff]
    %v1170 = vld [vmem:[%s3 + $0x490] sm:$0xff]
    %v1171 = vld [vmem:[%s3 + $0x498] sm:$0xff]
    %v1172 = vld [vmem:[%s3 + $0x4a0] sm:$0xff]
    %v1173 = vld [vmem:[%s3 + $0x4a8] sm:$0xff]
    %v1174 = vld [vmem:[%s3 + $0x4b0] sm:$0xff]
    %v1175 = vld [vmem:[%s3 + $0x4b8] sm:$0xff]
    %v1176 = vld [vmem:[%s3 + $0x4c0] sm:$0xff]
    %v1177 = vld [vmem:[%s3 + $0x4c8] sm:$0xff]
    %v1178 = vld [vmem:[%s3 + $0x4d0] sm:$0xff]
    %v1179 = vld [vmem:[%s3 + $0x4d8] sm:$0xff]
    %v1180 = vld [vmem:[%s3 + $0x4e0] sm:$0xff]
    %v1181 = vld [vmem:[%s3 + $0x4e8] sm:$0xff]
    %v1182 = vld [vmem:[%s3 + $0x4f0] sm:$0xff]
    %v1183 = vld [vmem:[%s3 + $0x4f8] sm:$0xff]
    %v1184 = vld [vmem:[%s3 + $0x500] sm:$0xff]
    %v1185 = vld [vmem:[%s3 + $0x508] sm:$0xff]
    %v1186 = vld [vmem:[%s3 + $0x510] sm:$0xff]
    %v1187 = vld [vmem:[%s3 + $0x518] sm:$0xff]
    %v1188 = vld [vmem:[%s3 + $0x520] sm:$0xff]
    %v1189 = vld [vmem:[%s3 + $0x528] sm:$0xff]
    %v1190 = vld [vmem:[%s3 + $0x530] sm:$0xff]
    %v1191 = vld [vmem:[%s3 + $0x538] sm:$0xff]
    %v1192 = vld [vmem:[%s3 + $0x540] sm:$0xff]
    %v1193 = vld [vmem:[%s3 + $0x548] sm:$0xff]
    %v1194 = vld [vmem:[%s3 + $0x550] sm:$0xff]
    %v1195 = vld [vmem:[%s3 + $0x558] sm:$0xff]
    %v1196 = vld [vmem:[%s3 + $0x560] sm:$0xff]
    %v1197 = vld [vmem:[%s3 + $0x568] sm:$0xff]
    %v1198 = vld [vmem:[%s3 + $0x570] sm:$0xff]
    %v1199 = vld [vmem:[%s3 + $0x578] sm:$0xff]
    %v1200 = vld [vmem:[%s3 + $0x580] sm:$0xff]
    %v1201 = vld [vmem:[%s3 + $0x588] sm:$0xff]
    %v1202 = vld [vmem:[%s3 + $0x590] sm:$0xff]
    %v1203 = vld [vmem:[%s3 + $0x598] sm:$0xff]
    %v1204 = vld [vmem:[%s3 + $0x5a0] sm:$0xff]
    %v1205 = vld [vmem:[%s3 + $0x5a8] sm:$0xff]
    %v1206 = vld [vmem:[%s3 + $0x5b0] sm:$0xff]
    %v1207 = vld [vmem:[%s3 + $0x5b8] sm:$0xff]
    %v1208 = vld [vmem:[%s3 + $0x5c0] sm:$0xff]
    %v1209 = vld [vmem:[%s3 + $0x5c8] sm:$0xff]
    %v1210 = vld [vmem:[%s3 + $0x5d0] sm:$0xff]
    %v1211 = vld [vmem:[%s3 + $0x5d8] sm:$0xff]
    %v1212 = vld [vmem:[%s3 + $0x5e0] sm:$0xff]
    %v1213 = vld [vmem:[%s3 + $0x5e8] sm:$0xff]
    %v1214 = vld [vmem:[%s3 + $0x5f0] sm:$0xff]
    %v1215 = vld [vmem:[%s3 + $0x5f8] sm:$0xff]
    %v1216 = vld [vmem:[%s3 + $0x600] sm:$0xff]
    %v1217 = vld [vmem:[%s3 + $0x608] sm:$0xff]
    %v1218 = vld [vmem:[%s3 + $0x610] sm:$0xff]
    %v1219 = vld [vmem:[%s3 + $0x618] sm:$0xff]
    %v1220 = vld [vmem:[%s3 + $0x620] sm:$0xff]
    %v1221 = vld [vmem:[%s3 + $0x628] sm:$0xff]
    %v1222 = vld [vmem:[%s3 + $0x630] sm:$0xff]
    %v1223 = vld [vmem:[%s3 + $0x638] sm:$0xff]
    %v1224 = vld [vmem:[%s3 + $0x640] sm:$0xff]
    %v1225 = vld [vmem:[%s3 + $0x648] sm:$0xff]
    %v1226 = vld [vmem:[%s3 + $0x650] sm:$0xff]
    %v1227 = vld [vmem:[%s3 + $0x658] sm:$0xff]
    %v1228 = vld [vmem:[%s3 + $0x660] sm:$0xff]
    %v1229 = vld [vmem:[%s3 + $0x668] sm:$0xff]
    %v1230 = vld [vmem:[%s3 + $0x670] sm:$0xff]
    %v1231 = vld [vmem:[%s3 + $0x678] sm:$0xff]
    %v1232 = vld [vmem:[%s3 + $0x680] sm:$0xff]
    %v1233 = vld [vmem:[%s3 + $0x688] sm:$0xff]
    %v1234 = vld [vmem:[%s3 + $0x690] sm:$0xff]
    %v1235 = vld [vmem:[%s3 + $0x698] sm:$0xff]
    %v1236 = vld [vmem:[%s3 + $0x6a0] sm:$0xff]
    %v1237 = vld [vmem:[%s3 + $0x6a8] sm:$0xff]
    %v1238 = vld [vmem:[%s3 + $0x6b0] sm:$0xff]
    %v1239 = vld [vmem:[%s3 + $0x6b8] sm:$0xff]
    %v1240 = vld [vmem:[%s3 + $0x6c0] sm:$0xff]
    %v1241 = vld [vmem:[%s3 + $0x6c8] sm:$0xff]
    %v1242 = vld [vmem:[%s3 + $0x6d0] sm:$0xff]
    %v1243 = vld [vmem:[%s3 + $0x6d8] sm:$0xff]
    %v1244 = vld [vmem:[%s3 + $0x6e0] sm:$0xff]
    %v1245 = vld [vmem:[%s3 + $0x6e8] sm:$0xff]
    %v1246 = vld [vmem:[%s3 + $0x6f0] sm:$0xff]
    %v1247 = vld [vmem:[%s3 + $0x6f8] sm:$0xff]
    %v1248 = vld [vmem:[%s3 + $0x700] sm:$0xff]
    %v1249 = vld [vmem:[%s3 + $0x708] sm:$0xff]
    %v1250 = vld [vmem:[%s3 + $0x710] sm:$0xff]
    %v1251 = vld [vmem:[%s3 + $0x718] sm:$0xff]
    %v1252 = vld [vmem:[%s3 + $0x720] sm:$0xff]
    %v1253 = vld [vmem:[%s3 + $0x728] sm:$0xff]
    %v1254 = vld [vmem:[%s3 + $0x730] sm:$0xff]
    %v1255 = vld [vmem:[%s3 + $0x738] sm:$0xff]
    %v1256 = vld [vmem:[%s3 + $0x740] sm:$0xff]
    %v1257 = vld [vmem:[%s3 + $0x748] sm:$0xff]
    %v1258 = vld [vmem:[%s3 + $0x750] sm:$0xff]
    %v1259 = vld [vmem:[%s3 + $0x758] sm:$0xff]
    %v1260 = vld [vmem:[%s3 + $0x760] sm:$0xff]
    %v1261 = vld [vmem:[%s3 + $0x768] sm:$0xff]
    %v1262 = vld [vmem:[%s3 + $0x770] sm:$0xff]
    %v1263 = vld [vmem:[%s3 + $0x778] sm:$0xff]
    %v1264 = vld [vmem:[%s3 + $0x780] sm:$0xff]
    %v1265 = vld [vmem:[%s3 + $0x788] sm:$0xff]
    %v1266 = vld [vmem:[%s3 + $0x790] sm:$0xff]
    %v1267 = vld [vmem:[%s3 + $0x798] sm:$0xff]
    %v1268 = vld [vmem:[%s3 + $0x7a0] sm:$0xff]
    %v1269 = vld [vmem:[%s3 + $0x7a8] sm:$0xff]
    %v1270 = vld [vmem:[%s3 + $0x7b0] sm:$0xff]
    %v1271 = vld [vmem:[%s3 + $0x7b8] sm:$0xff]
    %v1272 = vld [vmem:[%s3 + $0x7c0] sm:$0xff]
    %v1273 = vld [vmem:[%s3 + $0x7c8] sm:$0xff]
    %v1274 = vld [vmem:[%s3 + $0x7d0] sm:$0xff]
    %v1275 = vld [vmem:[%s3 + $0x7d8] sm:$0xff]
    %v1276 = vld [vmem:[%s3 + $0x7e0] sm:$0xff]
    %v1277 = vld [vmem:[%s3 + $0x7e8] sm:$0xff]
    %v1278 = vld [vmem:[%s3 + $0x7f0] sm:$0xff]
    %v1279 = vld [vmem:[%s3 + $0x7f8] sm:$0xff]
    %v1280 = vld [vmem:[%s4] sm:$0xf]
    %v1282 = vlaneseq
    %v1283 = vshrl.u32 %v1282, 7
    %v1284 = vsub.s32 0, %v1283
    %v1285 = vrot.slane %v1280, %v1284
    %v1286 = vlaneseq
    %v1287 = vshrl.u32 %v1286, 7
    %v1288 = vsub.s32 1, %v1287
    %v1289 = vrot.slane %v1280, %v1288
    %v1290 = vlaneseq
    %v1291 = vshrl.u32 %v1290, 7
    %v1292 = vsub.s32 2, %v1291
    %v1293 = vrot.slane %v1280, %v1292
    %v1294 = vlaneseq
    %v1295 = vshrl.u32 %v1294, 7
    %v1296 = vsub.s32 3, %v1295
    %v1297 = vrot.slane %v1280, %v1296
    %1302 = vmatprep.subr.mxu0 %v1025
    %1303 = vmatpush1.msra.mxu0 %v1024
    %1304 = vmatprep.subr.mxu0 %v1029
    %1305 = vmatpush1.msra.mxu0 %v1028
    %1306 = vmatprep.subr.mxu0 %v1033
    %1307 = vmatpush1.msra.mxu0 %v1032
    %1308 = vmatprep.subr.mxu0 %v1037
    %1309 = vmatpush1.msra.mxu0 %v1036
    %1310 = vmatprep.subr.mxu0 %v1041
    %1311 = vmatpush1.msra.mxu0 %v1040
    %1312 = vmatprep.subr.mxu0 %v1045
    %1313 = vmatpush1.msra.mxu0 %v1044
    %1314 = vmatprep.subr.mxu0 %v1049
    %1315 = vmatpush1.msra.mxu0 %v1048
    %1316 = vmatprep.subr.mxu0 %v1053
    %1317 = vmatpush1.msra.mxu0 %v1052
    %1318 = vmatprep.subr.mxu0 %v1057
    %1319 = vmatpush1.msra.mxu0 %v1056
    %1320 = vmatprep.subr.mxu0 %v1061
    %1321 = vmatpush1.msra.mxu0 %v1060
    %1322 = vmatprep.subr.mxu0 %v1065
    %1323 = vmatpush1.msra.mxu0 %v1064
    %1324 = vmatprep.subr.mxu0 %v1069
    %1325 = vmatpush1.msra.mxu0 %v1068
    %1326 = vmatprep.subr.mxu0 %v1073
    %1327 = vmatpush1.msra.mxu0 %v1072
    %1328 = vmatprep.subr.mxu0 %v1077
    %1329 = vmatpush1.msra.mxu0 %v1076
    %1330 = vmatprep.subr.mxu0 %v1081
    %1331 = vmatpush1.msra.mxu0 %v1080
    %1332 = vmatprep.subr.mxu0 %v1085
    %1333 = vmatpush1.msra.mxu0 %v1084
    %1334 = vmatprep.subr.mxu0 %v1089
    %1335 = vmatpush1.msra.mxu0 %v1088
    %1336 = vmatprep.subr.mxu0 %v1093
    %1337 = vmatpush1.msra.mxu0 %v1092
    %1338 = vmatprep.subr.mxu0 %v1097
    %1339 = vmatpush1.msra.mxu0 %v1096
    %1340 = vmatprep.subr.mxu0 %v1101
    %1341 = vmatpush1.msra.mxu0 %v1100
    %1342 = vmatprep.subr.mxu0 %v1105
    %1343 = vmatpush1.msra.mxu0 %v1104
    %1344 = vmatprep.subr.mxu0 %v1109
    %1345 = vmatpush1.msra.mxu0 %v1108
    %1346 = vmatprep.subr.mxu0 %v1113
    %1347 = vmatpush1.msra.mxu0 %v1112
    %1348 = vmatprep.subr.mxu0 %v1117
    %1349 = vmatpush1.msra.mxu0 %v1116
    %1350 = vmatprep.subr.mxu0 %v1121
    %1351 = vmatpush1.msra.mxu0 %v1120
    %1352 = vmatprep.subr.mxu0 %v1125
    %1353 = vmatpush1.msra.mxu0 %v1124
    %1354 = vmatprep.subr.mxu0 %v1129
    %1355 = vmatpush1.msra.mxu0 %v1128
    %1356 = vmatprep.subr.mxu0 %v1133
    %1357 = vmatpush1.msra.mxu0 %v1132
    %1358 = vmatprep.subr.mxu0 %v1137
    %1359 = vmatpush1.msra.mxu0 %v1136
    %1360 = vmatprep.subr.mxu0 %v1141
    %1361 = vmatpush1.msra.mxu0 %v1140
    %1362 = vmatprep.subr.mxu0 %v1145
    %1363 = vmatpush1.msra.mxu0 %v1144
    %1364 = vmatprep.subr.mxu0 %v1149
    %1365 = vmatpush1.msra.mxu0 %v1148
    %1366 = vmatprep.mubr.f32.mxu0 %v1021
    %1367 = vmatmul.mubr.f32.gmra.mrb[0].mxu0 %v1020
    %v1368 = vpop.f32.mrb[0].mxu0
    %v1369 = vadd.f32 %v1285, %v1368
    %v1370 = vpop.f32.mrb[0].mxu0
    %v1371 = vadd.f32 %v1289, %v1370
    %1372 = vdwg.mxu0
    %1373 = vmatprep.subr.mxu0 %v1153
    %1374 = vmatpush1.msra.mxu0 %v1152
    %1375 = vmatprep.subr.mxu0 %v1157
    %1376 = vmatpush1.msra.mxu0 %v1156
    %1377 = vmatprep.subr.mxu0 %v1161
    %1378 = vmatpush1.msra.mxu0 %v1160
    %1379 = vmatprep.subr.mxu0 %v1165
    %1380 = vmatpush1.msra.mxu0 %v1164
    %1381 = vmatprep.subr.mxu0 %v1169
    %1382 = vmatpush1.msra.mxu0 %v1168
    %1383 = vmatprep.subr.mxu0 %v1173
    %1384 = vmatpush1.msra.mxu0 %v1172
    %1385 = vmatprep.subr.mxu0 %v1177
    %1386 = vmatpush1.msra.mxu0 %v1176
    %1387 = vmatprep.subr.mxu0 %v1181
    %1388 = vmatpush1.msra.mxu0 %v1180
    %1389 = vmatprep.subr.mxu0 %v1185
    %1390 = vmatpush1.msra.mxu0 %v1184
    %1391 = vmatprep.subr.mxu0 %v1189
    %1392 = vmatpush1.msra.mxu0 %v1188
    %1393 = vmatprep.subr.mxu0 %v1193
    %1394 = vmatpush1.msra.mxu0 %v1192
    %1395 = vmatprep.subr.mxu0 %v1197
    %1396 = vmatpush1.msra.mxu0 %v1196
    %1397 = vmatprep.subr.mxu0 %v1201
    %1398 = vmatpush1.msra.mxu0 %v1200
    %1399 = vmatprep.subr.mxu0 %v1205
    %1400 = vmatpush1.msra.mxu0 %v1204
    %1401 = vmatprep.subr.mxu0 %v1209
    %1402 = vmatpush1.msra.mxu0 %v1208
    %1403 = vmatprep.subr.mxu0 %v1213
    %1404 = vmatpush1.msra.mxu0 %v1212
    %1405 = vmatprep.subr.mxu0 %v1217
    %1406 = vmatpush1.msra.mxu0 %v1216
    %1407 = vmatprep.subr.mxu0 %v1221
    %1408 = vmatpush1.msra.mxu0 %v1220
    %1409 = vmatprep.subr.mxu0 %v1225
    %1410 = vmatpush1.msra.mxu0 %v1224
    %1411 = vmatprep.subr.mxu0 %v1229
    %1412 = vmatpush1.msra.mxu0 %v1228
    %1413 = vmatprep.subr.mxu0 %v1233
    %1414 = vmatpush1.msra.mxu0 %v1232
    %1415 = vmatprep.subr.mxu0 %v1237
    %1416 = vmatpush1.msra.mxu0 %v1236
    %1417 = vmatprep.subr.mxu0 %v1241
    %1418 = vmatpush1.msra.mxu0 %v1240
    %1419 = vmatprep.subr.mxu0 %v1245
    %1420 = vmatpush1.msra.mxu0 %v1244
    %1421 = vmatprep.subr.mxu0 %v1249
    %1422 = vmatpush1.msra.mxu0 %v1248
    %1423 = vmatprep.subr.mxu0 %v1253
    %1424 = vmatpush1.msra.mxu0 %v1252
    %1425 = vmatprep.subr.mxu0 %v1257
    %1426 = vmatpush1.msra.mxu0 %v1256
    %1427 = vmatprep.subr.mxu0 %v1261
    %1428 = vmatpush1.msra.mxu0 %v1260
    %1429 = vmatprep.subr.mxu0 %v1265
    %1430 = vmatpush1.msra.mxu0 %v1264
    %1431 = vmatprep.subr.mxu0 %v1269
    %1432 = vmatpush1.msra.mxu0 %v1268
    %1433 = vmatprep.subr.mxu0 %v1273
    %1434 = vmatpush1.msra.mxu0 %v1272
    %1435 = vmatprep.subr.mxu0 %v1277
    %1436 = vmatpush1.msra.mxu0 %v1276
    %1437 = vmatprep.mubr.f32.mxu0 %v1023
    %1438 = vmatmul.mubr.f32.gmra.mrb[0].mxu0 %v1022
    %v1439 = vpop.f32.mrb[0].mxu0
    %v1440 = vadd.f32 %v1369, %v1439
    %v1441 = vpop.f32.mrb[0].mxu0
    %v1442 = vadd.f32 %v1371, %v1441
    %1443 = vdwg.mxu0
    %1444 = vmatprep.subr.mxu0 %v1027
    %1445 = vmatpush1.msra.mxu0 %v1026
    %1446 = vmatprep.subr.mxu0 %v1031
    %1447 = vmatpush1.msra.mxu0 %v1030
    %1448 = vmatprep.subr.mxu0 %v1035
    %1449 = vmatpush1.msra.mxu0 %v1034
    %1450 = vmatprep.subr.mxu0 %v1039
    %1451 = vmatpush1.msra.mxu0 %v1038
    %1452 = vmatprep.subr.mxu0 %v1043
    %1453 = vmatpush1.msra.mxu0 %v1042
    %1454 = vmatprep.subr.mxu0 %v1047
    %1455 = vmatpush1.msra.mxu0 %v1046
    %1456 = vmatprep.subr.mxu0 %v1051
    %1457 = vmatpush1.msra.mxu0 %v1050
    %1458 = vmatprep.subr.mxu0 %v1055
    %1459 = vmatpush1.msra.mxu0 %v1054
    %1460 = vmatprep.subr.mxu0 %v1059
    %1461 = vmatpush1.msra.mxu0 %v1058
    %1462 = vmatprep.subr.mxu0 %v1063
    %1463 = vmatpush1.msra.mxu0 %v1062
    %1464 = vmatprep.subr.mxu0 %v1067
    %1465 = vmatpush1.msra.mxu0 %v1066
    %1466 = vmatprep.subr.mxu0 %v1071
    %1467 = vmatpush1.msra.mxu0 %v1070
    %1468 = vmatprep.subr.mxu0 %v1075
    %1469 = vmatpush1.msra.mxu0 %v1074
    %1470 = vmatprep.subr.mxu0 %v1079
    %1471 = vmatpush1.msra.mxu0 %v1078
    %1472 = vmatprep.subr.mxu0 %v1083
    %1473 = vmatpush1.msra.mxu0 %v1082
    %1474 = vmatprep.subr.mxu0 %v1087
    %1475 = vmatpush1.msra.mxu0 %v1086
    %1476 = vmatprep.subr.mxu0 %v1091
    %1477 = vmatpush1.msra.mxu0 %v1090
    %1478 = vmatprep.subr.mxu0 %v1095
    %1479 = vmatpush1.msra.mxu0 %v1094
    %1480 = vmatprep.subr.mxu0 %v1099
    %1481 = vmatpush1.msra.mxu0 %v1098
    %1482 = vmatprep.subr.mxu0 %v1103
    %1483 = vmatpush1.msra.mxu0 %v1102
    %1484 = vmatprep.subr.mxu0 %v1107
    %1485 = vmatpush1.msra.mxu0 %v1106
    %1486 = vmatprep.subr.mxu0 %v1111
    %1487 = vmatpush1.msra.mxu0 %v1110
    %1488 = vmatprep.subr.mxu0 %v1115
    %1489 = vmatpush1.msra.mxu0 %v1114
    %1490 = vmatprep.subr.mxu0 %v1119
    %1491 = vmatpush1.msra.mxu0 %v1118
    %1492 = vmatprep.subr.mxu0 %v1123
    %1493 = vmatpush1.msra.mxu0 %v1122
    %1494 = vmatprep.subr.mxu0 %v1127
    %1495 = vmatpush1.msra.mxu0 %v1126
    %1496 = vmatprep.subr.mxu0 %v1131
    %1497 = vmatpush1.msra.mxu0 %v1130
    %1498 = vmatprep.subr.mxu0 %v1135
    %1499 = vmatpush1.msra.mxu0 %v1134
    %1500 = vmatprep.subr.mxu0 %v1139
    %1501 = vmatpush1.msra.mxu0 %v1138
    %1502 = vmatprep.subr.mxu0 %v1143
    %1503 = vmatpush1.msra.mxu0 %v1142
    %1504 = vmatprep.subr.mxu0 %v1147
    %1505 = vmatpush1.msra.mxu0 %v1146
    %1506 = vmatprep.subr.mxu0 %v1151
    %1507 = vmatpush1.msra.mxu0 %v1150
    %1508 = vmatprep.mubr.f32.mxu0 %v1021
    %1509 = vmatmul.mubr.f32.gmra.mrb[0].mxu0 %v1020
    %v1510 = vpop.f32.mrb[0].mxu0
    %v1511 = vadd.f32 %v1293, %v1510
    %v1512 = vpop.f32.mrb[0].mxu0
    %v1513 = vadd.f32 %v1297, %v1512
    %1514 = vdwg.mxu0
    %1515 = vmatprep.subr.mxu0 %v1155
    %1516 = vmatpush1.msra.mxu0 %v1154
    %1517 = vmatprep.subr.mxu0 %v1159
    %1518 = vmatpush1.msra.mxu0 %v1158
    %1519 = vmatprep.subr.mxu0 %v1163
    %1520 = vmatpush1.msra.mxu0 %v1162
    %1521 = vmatprep.subr.mxu0 %v1167
    %1522 = vmatpush1.msra.mxu0 %v1166
    %1523 = vmatprep.subr.mxu0 %v1171
    %1524 = vmatpush1.msra.mxu0 %v1170
    %1525 = vmatprep.subr.mxu0 %v1175
    %1526 = vmatpush1.msra.mxu0 %v1174
    %1527 = vmatprep.subr.mxu0 %v1179
    %1528 = vmatpush1.msra.mxu0 %v1178
    %1529 = vmatprep.subr.mxu0 %v1183
    %1530 = vmatpush1.msra.mxu0 %v1182
    %1531 = vmatprep.subr.mxu0 %v1187
    %1532 = vmatpush1.msra.mxu0 %v1186
    %1533 = vmatprep.subr.mxu0 %v1191
    %1534 = vmatpush1.msra.mxu0 %v1190
    %1535 = vmatprep.subr.mxu0 %v1195
    %1536 = vmatpush1.msra.mxu0 %v1194
    %1537 = vmatprep.subr.mxu0 %v1199
    %1538 = vmatpush1.msra.mxu0 %v1198
    %1539 = vmatprep.subr.mxu0 %v1203
    %1540 = vmatpush1.msra.mxu0 %v1202
    %1541 = vmatprep.subr.mxu0 %v1207
    %1542 = vmatpush1.msra.mxu0 %v1206
    %1543 = vmatprep.subr.mxu0 %v1211
    %1544 = vmatpush1.msra.mxu0 %v1210
    %1545 = vmatprep.subr.mxu0 %v1215
    %1546 = vmatpush1.msra.mxu0 %v1214
    %1547 = vmatprep.subr.mxu0 %v1219
    %1548 = vmatpush1.msra.mxu0 %v1218
    %1549 = vmatprep.subr.mxu0 %v1223
    %1550 = vmatpush1.msra.mxu0 %v1222
    %1551 = vmatprep.subr.mxu0 %v1227
    %1552 = vmatpush1.msra.mxu0 %v1226
    %1553 = vmatprep.subr.mxu0 %v1231
    %1554 = vmatpush1.msra.mxu0 %v1230
    %1555 = vmatprep.subr.mxu0 %v1235
    %1556 = vmatpush1.msra.mxu0 %v1234
    %1557 = vmatprep.subr.mxu0 %v1239
    %1558 = vmatpush1.msra.mxu0 %v1238
    %1559 = vmatprep.subr.mxu0 %v1243
    %1560 = vmatpush1.msra.mxu0 %v1242
    %1561 = vmatprep.subr.mxu0 %v1247
    %1562 = vmatpush1.msra.mxu0 %v1246
    %1563 = vmatprep.subr.mxu0 %v1251
    %1564 = vmatpush1.msra.mxu0 %v1250
    %1565 = vmatprep.subr.mxu0 %v1255
    %1566 = vmatpush1.msra.mxu0 %v1254
    %1567 = vmatprep.subr.mxu0 %v1259
    %1568 = vmatpush1.msra.mxu0 %v1258
    %1569 = vmatprep.subr.mxu0 %v1263
    %1570 = vmatpush1.msra.mxu0 %v1262
    %1571 = vmatprep.subr.mxu0 %v1267
    %1572 = vmatpush1.msra.mxu0 %v1266
    %1573 = vmatprep.subr.mxu0 %v1271
    %1574 = vmatpush1.msra.mxu0 %v1270
    %1575 = vmatprep.subr.mxu0 %v1275
    %1576 = vmatpush1.msra.mxu0 %v1274
    %1577 = vmatprep.subr.mxu0 %v1279
    %1578 = vmatpush1.msra.mxu0 %v1278
    %1579 = vmatprep.mubr.f32.mxu0 %v1023
    %1580 = vmatmul.mubr.f32.gmra.mrb[0].mxu0 %v1022
    %v1581 = vpop.f32.mrb[0].mxu0
    %v1582 = vadd.f32 %v1511, %v1581
    %v1583 = vpop.f32.mrb[0].mxu0
    %v1584 = vadd.f32 %v1513, %v1583
    %1585 = vdwg.mxu0
    %v1586 = vmax.f32 %v1440, 0.0
    %v1587 = vmax.f32 %v1442, 0.0
    %v1588 = vmax.f32 %v1582, 0.0
    %v1589 = vmax.f32 %v1584, 0.0
    %v1590 = vld [vmem:[%s5] sm:$0xff]
    %v1591 = vld [vmem:[%s5 + $0x8] sm:$0xff]
    %v1592 = vld [vmem:[%s5 + $0x10] sm:$0xff]
    %v1593 = vld [vmem:[%s5 + $0x18] sm:$0xff]
    %v1594 = vld [vmem:[%s5 + $0x20] sm:$0xff]
    %v1595 = vld [vmem:[%s5 + $0x28] sm:$0xff]
    %v1596 = vld [vmem:[%s5 + $0x30] sm:$0xff]
    %v1597 = vld [vmem:[%s5 + $0x38] sm:$0xff]
    %v1598 = vld [vmem:[%s5 + $0x40] sm:$0xff]
    %v1599 = vld [vmem:[%s5 + $0x48] sm:$0xff]
    %v1600 = vld [vmem:[%s5 + $0x50] sm:$0xff]
    %v1601 = vld [vmem:[%s5 + $0x58] sm:$0xff]
    %v1602 = vld [vmem:[%s5 + $0x60] sm:$0xff]
    %v1603 = vld [vmem:[%s5 + $0x68] sm:$0xff]
    %v1604 = vld [vmem:[%s5 + $0x70] sm:$0xff]
    %v1605 = vld [vmem:[%s5 + $0x78] sm:$0xff]
    %v1606 = vld [vmem:[%s5 + $0x80] sm:$0xff]
    %v1607 = vld [vmem:[%s5 + $0x88] sm:$0xff]
    %v1608 = vld [vmem:[%s5 + $0x90] sm:$0xff]
    %v1609 = vld [vmem:[%s5 + $0x98] sm:$0xff]
    %v1610 = vld [vmem:[%s5 + $0xa0] sm:$0xff]
    %v1611 = vld [vmem:[%s5 + $0xa8] sm:$0xff]
    %v1612 = vld [vmem:[%s5 + $0xb0] sm:$0xff]
    %v1613 = vld [vmem:[%s5 + $0xb8] sm:$0xff]
    %v1614 = vld [vmem:[%s5 + $0xc0] sm:$0xff]
    %v1615 = vld [vmem:[%s5 + $0xc8] sm:$0xff]
    %v1616 = vld [vmem:[%s5 + $0xd0] sm:$0xff]
    %v1617 = vld [vmem:[%s5 + $0xd8] sm:$0xff]
    %v1618 = vld [vmem:[%s5 + $0xe0] sm:$0xff]
    %v1619 = vld [vmem:[%s5 + $0xe8] sm:$0xff]
    %v1620 = vld [vmem:[%s5 + $0xf0] sm:$0xff]
    %v1621 = vld [vmem:[%s5 + $0xf8] sm:$0xff]
    %v1622 = vld [vmem:[%s5 + $0x100] sm:$0xff]
    %v1623 = vld [vmem:[%s5 + $0x108] sm:$0xff]
    %v1624 = vld [vmem:[%s5 + $0x110] sm:$0xff]
    %v1625 = vld [vmem:[%s5 + $0x118] sm:$0xff]
    %v1626 = vld [vmem:[%s5 + $0x120] sm:$0xff]
    %v1627 = vld [vmem:[%s5 + $0x128] sm:$0xff]
    %v1628 = vld [vmem:[%s5 + $0x130] sm:$0xff]
    %v1629 = vld [vmem:[%s5 + $0x138] sm:$0xff]
    %v1630 = vld [vmem:[%s5 + $0x140] sm:$0xff]
    %v1631 = vld [vmem:[%s5 + $0x148] sm:$0xff]
    %v1632 = vld [vmem:[%s5 + $0x150] sm:$0xff]
    %v1633 = vld [vmem:[%s5 + $0x158] sm:$0xff]
    %v1634 = vld [vmem:[%s5 + $0x160] sm:$0xff]
    %v1635 = vld [vmem:[%s5 + $0x168] sm:$0xff]
    %v1636 = vld [vmem:[%s5 + $0x170] sm:$0xff]
    %v1637 = vld [vmem:[%s5 + $0x178] sm:$0xff]
    %v1638 = vld [vmem:[%s5 + $0x180] sm:$0xff]
    %v1639 = vld [vmem:[%s5 + $0x188] sm:$0xff]
    %v1640 = vld [vmem:[%s5 + $0x190] sm:$0xff]
    %v1641 = vld [vmem:[%s5 + $0x198] sm:$0xff]
    %v1642 = vld [vmem:[%s5 + $0x1a0] sm:$0xff]
    %v1643 = vld [vmem:[%s5 + $0x1a8] sm:$0xff]
    %v1644 = vld [vmem:[%s5 + $0x1b0] sm:$0xff]
    %v1645 = vld [vmem:[%s5 + $0x1b8] sm:$0xff]
    %v1646 = vld [vmem:[%s5 + $0x1c0] sm:$0xff]
    %v1647 = vld [vmem:[%s5 + $0x1c8] sm:$0xff]
    %v1648 = vld [vmem:[%s5 + $0x1d0] sm:$0xff]
    %v1649 = vld [vmem:[%s5 + $0x1d8] sm:$0xff]
    %v1650 = vld [vmem:[%s5 + $0x1e0] sm:$0xff]
    %v1651 = vld [vmem:[%s5 + $0x1e8] sm:$0xff]
    %v1652 = vld [vmem:[%s5 + $0x1f0] sm:$0xff]
    %v1653 = vld [vmem:[%s5 + $0x1f8] sm:$0xff]
    %v1654 = vld [vmem:[%s5 + $0x200] sm:$0xff]
    %v1655 = vld [vmem:[%s5 + $0x208] sm:$0xff]
    %v1656 = vld [vmem:[%s5 + $0x210] sm:$0xff]
    %v1657 = vld [vmem:[%s5 + $0x218] sm:$0xff]
    %v1658 = vld [vmem:[%s5 + $0x220] sm:$0xff]
    %v1659 = vld [vmem:[%s5 + $0x228] sm:$0xff]
    %v1660 = vld [vmem:[%s5 + $0x230] sm:$0xff]
    %v1661 = vld [vmem:[%s5 + $0x238] sm:$0xff]
    %v1662 = vld [vmem:[%s5 + $0x240] sm:$0xff]
    %v1663 = vld [vmem:[%s5 + $0x248] sm:$0xff]
    %v1664 = vld [vmem:[%s5 + $0x250] sm:$0xff]
    %v1665 = vld [vmem:[%s5 + $0x258] sm:$0xff]
    %v1666 = vld [vmem:[%s5 + $0x260] sm:$0xff]
    %v1667 = vld [vmem:[%s5 + $0x268] sm:$0xff]
    %v1668 = vld [vmem:[%s5 + $0x270] sm:$0xff]
    %v1669 = vld [vmem:[%s5 + $0x278] sm:$0xff]
    %v1670 = vld [vmem:[%s5 + $0x280] sm:$0xff]
    %v1671 = vld [vmem:[%s5 + $0x288] sm:$0xff]
    %v1672 = vld [vmem:[%s5 + $0x290] sm:$0xff]
    %v1673 = vld [vmem:[%s5 + $0x298] sm:$0xff]
    %v1674 = vld [vmem:[%s5 + $0x2a0] sm:$0xff]
    %v1675 = vld [vmem:[%s5 + $0x2a8] sm:$0xff]
    %v1676 = vld [vmem:[%s5 + $0x2b0] sm:$0xff]
    %v1677 = vld [vmem:[%s5 + $0x2b8] sm:$0xff]
    %v1678 = vld [vmem:[%s5 + $0x2c0] sm:$0xff]
    %v1679 = vld [vmem:[%s5 + $0x2c8] sm:$0xff]
    %v1680 = vld [vmem:[%s5 + $0x2d0] sm:$0xff]
    %v1681 = vld [vmem:[%s5 + $0x2d8] sm:$0xff]
    %v1682 = vld [vmem:[%s5 + $0x2e0] sm:$0xff]
    %v1683 = vld [vmem:[%s5 + $0x2e8] sm:$0xff]
    %v1684 = vld [vmem:[%s5 + $0x2f0] sm:$0xff]
    %v1685 = vld [vmem:[%s5 + $0x2f8] sm:$0xff]
    %v1686 = vld [vmem:[%s5 + $0x300] sm:$0xff]
    %v1687 = vld [vmem:[%s5 + $0x308] sm:$0xff]
    %v1688 = vld [vmem:[%s5 + $0x310] sm:$0xff]
    %v1689 = vld [vmem:[%s5 + $0x318] sm:$0xff]
    %v1690 = vld [vmem:[%s5 + $0x320] sm:$0xff]
    %v1691 = vld [vmem:[%s5 + $0x328] sm:$0xff]
    %v1692 = vld [vmem:[%s5 + $0x330] sm:$0xff]
    %v1693 = vld [vmem:[%s5 + $0x338] sm:$0xff]
    %v1694 = vld [vmem:[%s5 + $0x340] sm:$0xff]
    %v1695 = vld [vmem:[%s5 + $0x348] sm:$0xff]
    %v1696 = vld [vmem:[%s5 + $0x350] sm:$0xff]
    %v1697 = vld [vmem:[%s5 + $0x358] sm:$0xff]
    %v1698 = vld [vmem:[%s5 + $0x360] sm:$0xff]
    %v1699 = vld [vmem:[%s5 + $0x368] sm:$0xff]
    %v1700 = vld [vmem:[%s5 + $0x370] sm:$0xff]
    %v1701 = vld [vmem:[%s5 + $0x378] sm:$0xff]
    %v1702 = vld [vmem:[%s5 + $0x380] sm:$0xff]
    %v1703 = vld [vmem:[%s5 + $0x388] sm:$0xff]
    %v1704 = vld [vmem:[%s5 + $0x390] sm:$0xff]
    %v1705 = vld [vmem:[%s5 + $0x398] sm:$0xff]
    %v1706 = vld [vmem:[%s5 + $0x3a0] sm:$0xff]
    %v1707 = vld [vmem:[%s5 + $0x3a8] sm:$0xff]
    %v1708 = vld [vmem:[%s5 + $0x3b0] sm:$0xff]
    %v1709 = vld [vmem:[%s5 + $0x3b8] sm:$0xff]
    %v1710 = vld [vmem:[%s5 + $0x3c0] sm:$0xff]
    %v1711 = vld [vmem:[%s5 + $0x3c8] sm:$0xff]
    %v1712 = vld [vmem:[%s5 + $0x3d0] sm:$0xff]
    %v1713 = vld [vmem:[%s5 + $0x3d8] sm:$0xff]
    %v1714 = vld [vmem:[%s5 + $0x3e0] sm:$0xff]
    %v1715 = vld [vmem:[%s5 + $0x3e8] sm:$0xff]
    %v1716 = vld [vmem:[%s5 + $0x3f0] sm:$0xff]
    %v1717 = vld [vmem:[%s5 + $0x3f8] sm:$0xff]
    %v1718 = vld [vmem:[%s5 + $0x400] sm:$0xff]
    %v1719 = vld [vmem:[%s5 + $0x408] sm:$0xff]
    %v1720 = vld [vmem:[%s5 + $0x410] sm:$0xff]
    %v1721 = vld [vmem:[%s5 + $0x418] sm:$0xff]
    %v1722 = vld [vmem:[%s5 + $0x420] sm:$0xff]
    %v1723 = vld [vmem:[%s5 + $0x428] sm:$0xff]
    %v1724 = vld [vmem:[%s5 + $0x430] sm:$0xff]
    %v1725 = vld [vmem:[%s5 + $0x438] sm:$0xff]
    %v1726 = vld [vmem:[%s5 + $0x440] sm:$0xff]
    %v1727 = vld [vmem:[%s5 + $0x448] sm:$0xff]
    %v1728 = vld [vmem:[%s5 + $0x450] sm:$0xff]
    %v1729 = vld [vmem:[%s5 + $0x458] sm:$0xff]
    %v1730 = vld [vmem:[%s5 + $0x460] sm:$0xff]
    %v1731 = vld [vmem:[%s5 + $0x468] sm:$0xff]
    %v1732 = vld [vmem:[%s5 + $0x470] sm:$0xff]
    %v1733 = vld [vmem:[%s5 + $0x478] sm:$0xff]
    %v1734 = vld [vmem:[%s5 + $0x480] sm:$0xff]
    %v1735 = vld [vmem:[%s5 + $0x488] sm:$0xff]
    %v1736 = vld [vmem:[%s5 + $0x490] sm:$0xff]
    %v1737 = vld [vmem:[%s5 + $0x498] sm:$0xff]
    %v1738 = vld [vmem:[%s5 + $0x4a0] sm:$0xff]
    %v1739 = vld [vmem:[%s5 + $0x4a8] sm:$0xff]
    %v1740 = vld [vmem:[%s5 + $0x4b0] sm:$0xff]
    %v1741 = vld [vmem:[%s5 + $0x4b8] sm:$0xff]
    %v1742 = vld [vmem:[%s5 + $0x4c0] sm:$0xff]
    %v1743 = vld [vmem:[%s5 + $0x4c8] sm:$0xff]
    %v1744 = vld [vmem:[%s5 + $0x4d0] sm:$0xff]
    %v1745 = vld [vmem:[%s5 + $0x4d8] sm:$0xff]
    %v1746 = vld [vmem:[%s5 + $0x4e0] sm:$0xff]
    %v1747 = vld [vmem:[%s5 + $0x4e8] sm:$0xff]
    %v1748 = vld [vmem:[%s5 + $0x4f0] sm:$0xff]
    %v1749 = vld [vmem:[%s5 + $0x4f8] sm:$0xff]
    %v1750 = vld [vmem:[%s5 + $0x500] sm:$0xff]
    %v1751 = vld [vmem:[%s5 + $0x508] sm:$0xff]
    %v1752 = vld [vmem:[%s5 + $0x510] sm:$0xff]
    %v1753 = vld [vmem:[%s5 + $0x518] sm:$0xff]
    %v1754 = vld [vmem:[%s5 + $0x520] sm:$0xff]
    %v1755 = vld [vmem:[%s5 + $0x528] sm:$0xff]
    %v1756 = vld [vmem:[%s5 + $0x530] sm:$0xff]
    %v1757 = vld [vmem:[%s5 + $0x538] sm:$0xff]
    %v1758 = vld [vmem:[%s5 + $0x540] sm:$0xff]
    %v1759 = vld [vmem:[%s5 + $0x548] sm:$0xff]
    %v1760 = vld [vmem:[%s5 + $0x550] sm:$0xff]
    %v1761 = vld [vmem:[%s5 + $0x558] sm:$0xff]
    %v1762 = vld [vmem:[%s5 + $0x560] sm:$0xff]
    %v1763 = vld [vmem:[%s5 + $0x568] sm:$0xff]
    %v1764 = vld [vmem:[%s5 + $0x570] sm:$0xff]
    %v1765 = vld [vmem:[%s5 + $0x578] sm:$0xff]
    %v1766 = vld [vmem:[%s5 + $0x580] sm:$0xff]
    %v1767 = vld [vmem:[%s5 + $0x588] sm:$0xff]
    %v1768 = vld [vmem:[%s5 + $0x590] sm:$0xff]
    %v1769 = vld [vmem:[%s5 + $0x598] sm:$0xff]
    %v1770 = vld [vmem:[%s5 + $0x5a0] sm:$0xff]
    %v1771 = vld [vmem:[%s5 + $0x5a8] sm:$0xff]
    %v1772 = vld [vmem:[%s5 + $0x5b0] sm:$0xff]
    %v1773 = vld [vmem:[%s5 + $0x5b8] sm:$0xff]
    %v1774 = vld [vmem:[%s5 + $0x5c0] sm:$0xff]
    %v1775 = vld [vmem:[%s5 + $0x5c8] sm:$0xff]
    %v1776 = vld [vmem:[%s5 + $0x5d0] sm:$0xff]
    %v1777 = vld [vmem:[%s5 + $0x5d8] sm:$0xff]
    %v1778 = vld [vmem:[%s5 + $0x5e0] sm:$0xff]
    %v1779 = vld [vmem:[%s5 + $0x5e8] sm:$0xff]
    %v1780 = vld [vmem:[%s5 + $0x5f0] sm:$0xff]
    %v1781 = vld [vmem:[%s5 + $0x5f8] sm:$0xff]
    %v1782 = vld [vmem:[%s5 + $0x600] sm:$0xff]
    %v1783 = vld [vmem:[%s5 + $0x608] sm:$0xff]
    %v1784 = vld [vmem:[%s5 + $0x610] sm:$0xff]
    %v1785 = vld [vmem:[%s5 + $0x618] sm:$0xff]
    %v1786 = vld [vmem:[%s5 + $0x620] sm:$0xff]
    %v1787 = vld [vmem:[%s5 + $0x628] sm:$0xff]
    %v1788 = vld [vmem:[%s5 + $0x630] sm:$0xff]
    %v1789 = vld [vmem:[%s5 + $0x638] sm:$0xff]
    %v1790 = vld [vmem:[%s5 + $0x640] sm:$0xff]
    %v1791 = vld [vmem:[%s5 + $0x648] sm:$0xff]
    %v1792 = vld [vmem:[%s5 + $0x650] sm:$0xff]
    %v1793 = vld [vmem:[%s5 + $0x658] sm:$0xff]
    %v1794 = vld [vmem:[%s5 + $0x660] sm:$0xff]
    %v1795 = vld [vmem:[%s5 + $0x668] sm:$0xff]
    %v1796 = vld [vmem:[%s5 + $0x670] sm:$0xff]
    %v1797 = vld [vmem:[%s5 + $0x678] sm:$0xff]
    %v1798 = vld [vmem:[%s5 + $0x680] sm:$0xff]
    %v1799 = vld [vmem:[%s5 + $0x688] sm:$0xff]
    %v1800 = vld [vmem:[%s5 + $0x690] sm:$0xff]
    %v1801 = vld [vmem:[%s5 + $0x698] sm:$0xff]
    %v1802 = vld [vmem:[%s5 + $0x6a0] sm:$0xff]
    %v1803 = vld [vmem:[%s5 + $0x6a8] sm:$0xff]
    %v1804 = vld [vmem:[%s5 + $0x6b0] sm:$0xff]
    %v1805 = vld [vmem:[%s5 + $0x6b8] sm:$0xff]
    %v1806 = vld [vmem:[%s5 + $0x6c0] sm:$0xff]
    %v1807 = vld [vmem:[%s5 + $0x6c8] sm:$0xff]
    %v1808 = vld [vmem:[%s5 + $0x6d0] sm:$0xff]
    %v1809 = vld [vmem:[%s5 + $0x6d8] sm:$0xff]
    %v1810 = vld [vmem:[%s5 + $0x6e0] sm:$0xff]
    %v1811 = vld [vmem:[%s5 + $0x6e8] sm:$0xff]
    %v1812 = vld [vmem:[%s5 + $0x6f0] sm:$0xff]
    %v1813 = vld [vmem:[%s5 + $0x6f8] sm:$0xff]
    %v1814 = vld [vmem:[%s5 + $0x700] sm:$0xff]
    %v1815 = vld [vmem:[%s5 + $0x708] sm:$0xff]
    %v1816 = vld [vmem:[%s5 + $0x710] sm:$0xff]
    %v1817 = vld [vmem:[%s5 + $0x718] sm:$0xff]
    %v1818 = vld [vmem:[%s5 + $0x720] sm:$0xff]
    %v1819 = vld [vmem:[%s5 + $0x728] sm:$0xff]
    %v1820 = vld [vmem:[%s5 + $0x730] sm:$0xff]
    %v1821 = vld [vmem:[%s5 + $0x738] sm:$0xff]
    %v1822 = vld [vmem:[%s5 + $0x740] sm:$0xff]
    %v1823 = vld [vmem:[%s5 + $0x748] sm:$0xff]
    %v1824 = vld [vmem:[%s5 + $0x750] sm:$0xff]
    %v1825 = vld [vmem:[%s5 + $0x758] sm:$0xff]
    %v1826 = vld [vmem:[%s5 + $0x760] sm:$0xff]
    %v1827 = vld [vmem:[%s5 + $0x768] sm:$0xff]
    %v1828 = vld [vmem:[%s5 + $0x770] sm:$0xff]
    %v1829 = vld [vmem:[%s5 + $0x778] sm:$0xff]
    %v1830 = vld [vmem:[%s5 + $0x780] sm:$0xff]
    %v1831 = vld [vmem:[%s5 + $0x788] sm:$0xff]
    %v1832 = vld [vmem:[%s5 + $0x790] sm:$0xff]
    %v1833 = vld [vmem:[%s5 + $0x798] sm:$0xff]
    %v1834 = vld [vmem:[%s5 + $0x7a0] sm:$0xff]
    %v1835 = vld [vmem:[%s5 + $0x7a8] sm:$0xff]
    %v1836 = vld [vmem:[%s5 + $0x7b0] sm:$0xff]
    %v1837 = vld [vmem:[%s5 + $0x7b8] sm:$0xff]
    %v1838 = vld [vmem:[%s5 + $0x7c0] sm:$0xff]
    %v1839 = vld [vmem:[%s5 + $0x7c8] sm:$0xff]
    %v1840 = vld [vmem:[%s5 + $0x7d0] sm:$0xff]
    %v1841 = vld [vmem:[%s5 + $0x7d8] sm:$0xff]
    %v1842 = vld [vmem:[%s5 + $0x7e0] sm:$0xff]
    %v1843 = vld [vmem:[%s5 + $0x7e8] sm:$0xff]
    %v1844 = vld [vmem:[%s5 + $0x7f0] sm:$0xff]
    %v1845 = vld [vmem:[%s5 + $0x7f8] sm:$0xff]
    %v1846 = vld [vmem:[%s5 + $0x800] sm:$0xff]
    %v1847 = vld [vmem:[%s5 + $0x808] sm:$0xff]
    %v1848 = vld [vmem:[%s5 + $0x810] sm:$0xff]
    %v1849 = vld [vmem:[%s5 + $0x818] sm:$0xff]
    %v1850 = vld [vmem:[%s5 + $0x820] sm:$0xff]
    %v1851 = vld [vmem:[%s5 + $0x828] sm:$0xff]
    %v1852 = vld [vmem:[%s5 + $0x830] sm:$0xff]
    %v1853 = vld [vmem:[%s5 + $0x838] sm:$0xff]
    %v1854 = vld [vmem:[%s5 + $0x840] sm:$0xff]
    %v1855 = vld [vmem:[%s5 + $0x848] sm:$0xff]
    %v1856 = vld [vmem:[%s5 + $0x850] sm:$0xff]
    %v1857 = vld [vmem:[%s5 + $0x858] sm:$0xff]
    %v1858 = vld [vmem:[%s5 + $0x860] sm:$0xff]
    %v1859 = vld [vmem:[%s5 + $0x868] sm:$0xff]
    %v1860 = vld [vmem:[%s5 + $0x870] sm:$0xff]
    %v1861 = vld [vmem:[%s5 + $0x878] sm:$0xff]
    %v1862 = vld [vmem:[%s5 + $0x880] sm:$0xff]
    %v1863 = vld [vmem:[%s5 + $0x888] sm:$0xff]
    %v1864 = vld [vmem:[%s5 + $0x890] sm:$0xff]
    %v1865 = vld [vmem:[%s5 + $0x898] sm:$0xff]
    %v1866 = vld [vmem:[%s5 + $0x8a0] sm:$0xff]
    %v1867 = vld [vmem:[%s5 + $0x8a8] sm:$0xff]
    %v1868 = vld [vmem:[%s5 + $0x8b0] sm:$0xff]
    %v1869 = vld [vmem:[%s5 + $0x8b8] sm:$0xff]
    %v1870 = vld [vmem:[%s5 + $0x8c0] sm:$0xff]
    %v1871 = vld [vmem:[%s5 + $0x8c8] sm:$0xff]
    %v1872 = vld [vmem:[%s5 + $0x8d0] sm:$0xff]
    %v1873 = vld [vmem:[%s5 + $0x8d8] sm:$0xff]
    %v1874 = vld [vmem:[%s5 + $0x8e0] sm:$0xff]
    %v1875 = vld [vmem:[%s5 + $0x8e8] sm:$0xff]
    %v1876 = vld [vmem:[%s5 + $0x8f0] sm:$0xff]
    %v1877 = vld [vmem:[%s5 + $0x8f8] sm:$0xff]
    %v1878 = vld [vmem:[%s5 + $0x900] sm:$0xff]
    %v1879 = vld [vmem:[%s5 + $0x908] sm:$0xff]
    %v1880 = vld [vmem:[%s5 + $0x910] sm:$0xff]
    %v1881 = vld [vmem:[%s5 + $0x918] sm:$0xff]
    %v1882 = vld [vmem:[%s5 + $0x920] sm:$0xff]
    %v1883 = vld [vmem:[%s5 + $0x928] sm:$0xff]
    %v1884 = vld [vmem:[%s5 + $0x930] sm:$0xff]
    %v1885 = vld [vmem:[%s5 + $0x938] sm:$0xff]
    %v1886 = vld [vmem:[%s5 + $0x940] sm:$0xff]
    %v1887 = vld [vmem:[%s5 + $0x948] sm:$0xff]
    %v1888 = vld [vmem:[%s5 + $0x950] sm:$0xff]
    %v1889 = vld [vmem:[%s5 + $0x958] sm:$0xff]
    %v1890 = vld [vmem:[%s5 + $0x960] sm:$0xff]
    %v1891 = vld [vmem:[%s5 + $0x968] sm:$0xff]
    %v1892 = vld [vmem:[%s5 + $0x970] sm:$0xff]
    %v1893 = vld [vmem:[%s5 + $0x978] sm:$0xff]
    %v1894 = vld [vmem:[%s5 + $0x980] sm:$0xff]
    %v1895 = vld [vmem:[%s5 + $0x988] sm:$0xff]
    %v1896 = vld [vmem:[%s5 + $0x990] sm:$0xff]
    %v1897 = vld [vmem:[%s5 + $0x998] sm:$0xff]
    %v1898 = vld [vmem:[%s5 + $0x9a0] sm:$0xff]
    %v1899 = vld [vmem:[%s5 + $0x9a8] sm:$0xff]
    %v1900 = vld [vmem:[%s5 + $0x9b0] sm:$0xff]
    %v1901 = vld [vmem:[%s5 + $0x9b8] sm:$0xff]
    %v1902 = vld [vmem:[%s5 + $0x9c0] sm:$0xff]
    %v1903 = vld [vmem:[%s5 + $0x9c8] sm:$0xff]
    %v1904 = vld [vmem:[%s5 + $0x9d0] sm:$0xff]
    %v1905 = vld [vmem:[%s5 + $0x9d8] sm:$0xff]
    %v1906 = vld [vmem:[%s5 + $0x9e0] sm:$0xff]
    %v1907 = vld [vmem:[%s5 + $0x9e8] sm:$0xff]
    %v1908 = vld [vmem:[%s5 + $0x9f0] sm:$0xff]
    %v1909 = vld [vmem:[%s5 + $0x9f8] sm:$0xff]
    %v1910 = vld [vmem:[%s5 + $0xa00] sm:$0xff]
    %v1911 = vld [vmem:[%s5 + $0xa08] sm:$0xff]
    %v1912 = vld [vmem:[%s5 + $0xa10] sm:$0xff]
    %v1913 = vld [vmem:[%s5 + $0xa18] sm:$0xff]
    %v1914 = vld [vmem:[%s5 + $0xa20] sm:$0xff]
    %v1915 = vld [vmem:[%s5 + $0xa28] sm:$0xff]
    %v1916 = vld [vmem:[%s5 + $0xa30] sm:$0xff]
    %v1917 = vld [vmem:[%s5 + $0xa38] sm:$0xff]
    %v1918 = vld [vmem:[%s5 + $0xa40] sm:$0xff]
    %v1919 = vld [vmem:[%s5 + $0xa48] sm:$0xff]
    %v1920 = vld [vmem:[%s5 + $0xa50] sm:$0xff]
    %v1921 = vld [vmem:[%s5 + $0xa58] sm:$0xff]
    %v1922 = vld [vmem:[%s5 + $0xa60] sm:$0xff]
    %v1923 = vld [vmem:[%s5 + $0xa68] sm:$0xff]
    %v1924 = vld [vmem:[%s5 + $0xa70] sm:$0xff]
    %v1925 = vld [vmem:[%s5 + $0xa78] sm:$0xff]
    %v1926 = vld [vmem:[%s5 + $0xa80] sm:$0xff]
    %v1927 = vld [vmem:[%s5 + $0xa88] sm:$0xff]
    %v1928 = vld [vmem:[%s5 + $0xa90] sm:$0xff]
    %v1929 = vld [vmem:[%s5 + $0xa98] sm:$0xff]
    %v1930 = vld [vmem:[%s5 + $0xaa0] sm:$0xff]
    %v1931 = vld [vmem:[%s5 + $0xaa8] sm:$0xff]
    %v1932 = vld [vmem:[%s5 + $0xab0] sm:$0xff]
    %v1933 = vld [vmem:[%s5 + $0xab8] sm:$0xff]
    %v1934 = vld [vmem:[%s5 + $0xac0] sm:$0xff]
    %v1935 = vld [vmem:[%s5 + $0xac8] sm:$0xff]
    %v1936 = vld [vmem:[%s5 + $0xad0] sm:$0xff]
    %v1937 = vld [vmem:[%s5 + $0xad8] sm:$0xff]
    %v1938 = vld [vmem:[%s5 + $0xae0] sm:$0xff]
    %v1939 = vld [vmem:[%s5 + $0xae8] sm:$0xff]
    %v1940 = vld [vmem:[%s5 + $0xaf0] sm:$0xff]
    %v1941 = vld [vmem:[%s5 + $0xaf8] sm:$0xff]
    %v1942 = vld [vmem:[%s5 + $0xb00] sm:$0xff]
    %v1943 = vld [vmem:[%s5 + $0xb08] sm:$0xff]
    %v1944 = vld [vmem:[%s5 + $0xb10] sm:$0xff]
    %v1945 = vld [vmem:[%s5 + $0xb18] sm:$0xff]
    %v1946 = vld [vmem:[%s5 + $0xb20] sm:$0xff]
    %v1947 = vld [vmem:[%s5 + $0xb28] sm:$0xff]
    %v1948 = vld [vmem:[%s5 + $0xb30] sm:$0xff]
    %v1949 = vld [vmem:[%s5 + $0xb38] sm:$0xff]
    %v1950 = vld [vmem:[%s5 + $0xb40] sm:$0xff]
    %v1951 = vld [vmem:[%s5 + $0xb48] sm:$0xff]
    %v1952 = vld [vmem:[%s5 + $0xb50] sm:$0xff]
    %v1953 = vld [vmem:[%s5 + $0xb58] sm:$0xff]
    %v1954 = vld [vmem:[%s5 + $0xb60] sm:$0xff]
    %v1955 = vld [vmem:[%s5 + $0xb68] sm:$0xff]
    %v1956 = vld [vmem:[%s5 + $0xb70] sm:$0xff]
    %v1957 = vld [vmem:[%s5 + $0xb78] sm:$0xff]
    %v1958 = vld [vmem:[%s5 + $0xb80] sm:$0xff]
    %v1959 = vld [vmem:[%s5 + $0xb88] sm:$0xff]
    %v1960 = vld [vmem:[%s5 + $0xb90] sm:$0xff]
    %v1961 = vld [vmem:[%s5 + $0xb98] sm:$0xff]
    %v1962 = vld [vmem:[%s5 + $0xba0] sm:$0xff]
    %v1963 = vld [vmem:[%s5 + $0xba8] sm:$0xff]
    %v1964 = vld [vmem:[%s5 + $0xbb0] sm:$0xff]
    %v1965 = vld [vmem:[%s5 + $0xbb8] sm:$0xff]
    %v1966 = vld [vmem:[%s5 + $0xbc0] sm:$0xff]
    %v1967 = vld [vmem:[%s5 + $0xbc8] sm:$0xff]
    %v1968 = vld [vmem:[%s5 + $0xbd0] sm:$0xff]
    %v1969 = vld [vmem:[%s5 + $0xbd8] sm:$0xff]
    %v1970 = vld [vmem:[%s5 + $0xbe0] sm:$0xff]
    %v1971 = vld [vmem:[%s5 + $0xbe8] sm:$0xff]
    %v1972 = vld [vmem:[%s5 + $0xbf0] sm:$0xff]
    %v1973 = vld [vmem:[%s5 + $0xbf8] sm:$0xff]
    %v1974 = vld [vmem:[%s5 + $0xc00] sm:$0xff]
    %v1975 = vld [vmem:[%s5 + $0xc08] sm:$0xff]
    %v1976 = vld [vmem:[%s5 + $0xc10] sm:$0xff]
    %v1977 = vld [vmem:[%s5 + $0xc18] sm:$0xff]
    %v1978 = vld [vmem:[%s5 + $0xc20] sm:$0xff]
    %v1979 = vld [vmem:[%s5 + $0xc28] sm:$0xff]
    %v1980 = vld [vmem:[%s5 + $0xc30] sm:$0xff]
    %v1981 = vld [vmem:[%s5 + $0xc38] sm:$0xff]
    %v1982 = vld [vmem:[%s5 + $0xc40] sm:$0xff]
    %v1983 = vld [vmem:[%s5 + $0xc48] sm:$0xff]
    %v1984 = vld [vmem:[%s5 + $0xc50] sm:$0xff]
    %v1985 = vld [vmem:[%s5 + $0xc58] sm:$0xff]
    %v1986 = vld [vmem:[%s5 + $0xc60] sm:$0xff]
    %v1987 = vld [vmem:[%s5 + $0xc68] sm:$0xff]
    %v1988 = vld [vmem:[%s5 + $0xc70] sm:$0xff]
    %v1989 = vld [vmem:[%s5 + $0xc78] sm:$0xff]
    %v1990 = vld [vmem:[%s5 + $0xc80] sm:$0xff]
    %v1991 = vld [vmem:[%s5 + $0xc88] sm:$0xff]
    %v1992 = vld [vmem:[%s5 + $0xc90] sm:$0xff]
    %v1993 = vld [vmem:[%s5 + $0xc98] sm:$0xff]
    %v1994 = vld [vmem:[%s5 + $0xca0] sm:$0xff]
    %v1995 = vld [vmem:[%s5 + $0xca8] sm:$0xff]
    %v1996 = vld [vmem:[%s5 + $0xcb0] sm:$0xff]
    %v1997 = vld [vmem:[%s5 + $0xcb8] sm:$0xff]
    %v1998 = vld [vmem:[%s5 + $0xcc0] sm:$0xff]
    %v1999 = vld [vmem:[%s5 + $0xcc8] sm:$0xff]
    %v2000 = vld [vmem:[%s5 + $0xcd0] sm:$0xff]
    %v2001 = vld [vmem:[%s5 + $0xcd8] sm:$0xff]
    %v2002 = vld [vmem:[%s5 + $0xce0] sm:$0xff]
    %v2003 = vld [vmem:[%s5 + $0xce8] sm:$0xff]
    %v2004 = vld [vmem:[%s5 + $0xcf0] sm:$0xff]
    %v2005 = vld [vmem:[%s5 + $0xcf8] sm:$0xff]
    %v2006 = vld [vmem:[%s5 + $0xd00] sm:$0xff]
    %v2007 = vld [vmem:[%s5 + $0xd08] sm:$0xff]
    %v2008 = vld [vmem:[%s5 + $0xd10] sm:$0xff]
    %v2009 = vld [vmem:[%s5 + $0xd18] sm:$0xff]
    %v2010 = vld [vmem:[%s5 + $0xd20] sm:$0xff]
    %v2011 = vld [vmem:[%s5 + $0xd28] sm:$0xff]
    %v2012 = vld [vmem:[%s5 + $0xd30] sm:$0xff]
    %v2013 = vld [vmem:[%s5 + $0xd38] sm:$0xff]
    %v2014 = vld [vmem:[%s5 + $0xd40] sm:$0xff]
    %v2015 = vld [vmem:[%s5 + $0xd48] sm:$0xff]
    %v2016 = vld [vmem:[%s5 + $0xd50] sm:$0xff]
    %v2017 = vld [vmem:[%s5 + $0xd58] sm:$0xff]
    %v2018 = vld [vmem:[%s5 + $0xd60] sm:$0xff]
    %v2019 = vld [vmem:[%s5 + $0xd68] sm:$0xff]
    %v2020 = vld [vmem:[%s5 + $0xd70] sm:$0xff]
    %v2021 = vld [vmem:[%s5 + $0xd78] sm:$0xff]
    %v2022 = vld [vmem:[%s5 + $0xd80] sm:$0xff]
    %v2023 = vld [vmem:[%s5 + $0xd88] sm:$0xff]
    %v2024 = vld [vmem:[%s5 + $0xd90] sm:$0xff]
    %v2025 = vld [vmem:[%s5 + $0xd98] sm:$0xff]
    %v2026 = vld [vmem:[%s5 + $0xda0] sm:$0xff]
    %v2027 = vld [vmem:[%s5 + $0xda8] sm:$0xff]
    %v2028 = vld [vmem:[%s5 + $0xdb0] sm:$0xff]
    %v2029 = vld [vmem:[%s5 + $0xdb8] sm:$0xff]
    %v2030 = vld [vmem:[%s5 + $0xdc0] sm:$0xff]
    %v2031 = vld [vmem:[%s5 + $0xdc8] sm:$0xff]
    %v2032 = vld [vmem:[%s5 + $0xdd0] sm:$0xff]
    %v2033 = vld [vmem:[%s5 + $0xdd8] sm:$0xff]
    %v2034 = vld [vmem:[%s5 + $0xde0] sm:$0xff]
    %v2035 = vld [vmem:[%s5 + $0xde8] sm:$0xff]
    %v2036 = vld [vmem:[%s5 + $0xdf0] sm:$0xff]
    %v2037 = vld [vmem:[%s5 + $0xdf8] sm:$0xff]
    %v2038 = vld [vmem:[%s6] sm:$0x7f]
    %v2040 = vlaneseq
    %v2041 = vshrl.u32 %v2040, 7
    %v2042 = vsub.s32 0, %v2041
    %v2043 = vrot.slane %v2038, %v2042
    %v2044 = vlaneseq
    %v2045 = vshrl.u32 %v2044, 7
    %v2046 = vsub.s32 1, %v2045
    %v2047 = vrot.slane %v2038, %v2046
    %v2048 = vlaneseq
    %v2049 = vshrl.u32 %v2048, 7
    %v2050 = vsub.s32 2, %v2049
    %v2051 = vrot.slane %v2038, %v2050
    %v2052 = vlaneseq
    %v2053 = vshrl.u32 %v2052, 7
    %v2054 = vsub.s32 3, %v2053
    %v2055 = vrot.slane %v2038, %v2054
    %v2056 = vlaneseq
    %v2057 = vshrl.u32 %v2056, 7
    %v2058 = vsub.s32 4, %v2057
    %v2059 = vrot.slane %v2038, %v2058
    %v2060 = vlaneseq
    %v2061 = vshrl.u32 %v2060, 7
    %v2062 = vsub.s32 5, %v2061
    %v2063 = vrot.slane %v2038, %v2062
    %v2064 = vlaneseq
    %v2065 = vshrl.u32 %v2064, 7
    %v2066 = vsub.s32 6, %v2065
    %v2067 = vrot.slane %v2038, %v2066
    %2075 = vmatprep.subr.mxu0 %v1591
    %2076 = vmatpush1.msra.mxu0 %v1590
    %2077 = vmatprep.subr.mxu0 %v1598
    %2078 = vmatpush1.msra.mxu0 %v1597
    %2079 = vmatprep.subr.mxu0 %v1605
    %2080 = vmatpush1.msra.mxu0 %v1604
    %2081 = vmatprep.subr.mxu0 %v1612
    %2082 = vmatpush1.msra.mxu0 %v1611
    %2083 = vmatprep.subr.mxu0 %v1619
    %2084 = vmatpush1.msra.mxu0 %v1618
    %2085 = vmatprep.subr.mxu0 %v1626
    %2086 = vmatpush1.msra.mxu0 %v1625
    %2087 = vmatprep.subr.mxu0 %v1633
    %2088 = vmatpush1.msra.mxu0 %v1632
    %2089 = vmatprep.subr.mxu0 %v1640
    %2090 = vmatpush1.msra.mxu0 %v1639
    %2091 = vmatprep.subr.mxu0 %v1647
    %2092 = vmatpush1.msra.mxu0 %v1646
    %2093 = vmatprep.subr.mxu0 %v1654
    %2094 = vmatpush1.msra.mxu0 %v1653
    %2095 = vmatprep.subr.mxu0 %v1661
    %2096 = vmatpush1.msra.mxu0 %v1660
    %2097 = vmatprep.subr.mxu0 %v1668
    %2098 = vmatpush1.msra.mxu0 %v1667
    %2099 = vmatprep.subr.mxu0 %v1675
    %2100 = vmatpush1.msra.mxu0 %v1674
    %2101 = vmatprep.subr.mxu0 %v1682
    %2102 = vmatpush1.msra.mxu0 %v1681
    %2103 = vmatprep.subr.mxu0 %v1689
    %2104 = vmatpush1.msra.mxu0 %v1688
    %2105 = vmatprep.subr.mxu0 %v1696
    %2106 = vmatpush1.msra.mxu0 %v1695
    %2107 = vmatprep.subr.mxu0 %v1703
    %2108 = vmatpush1.msra.mxu0 %v1702
    %2109 = vmatprep.subr.mxu0 %v1710
    %2110 = vmatpush1.msra.mxu0 %v1709
    %2111 = vmatprep.subr.mxu0 %v1717
    %2112 = vmatpush1.msra.mxu0 %v1716
    %2113 = vmatprep.subr.mxu0 %v1724
    %2114 = vmatpush1.msra.mxu0 %v1723
    %2115 = vmatprep.subr.mxu0 %v1731
    %2116 = vmatpush1.msra.mxu0 %v1730
    %2117 = vmatprep.subr.mxu0 %v1738
    %2118 = vmatpush1.msra.mxu0 %v1737
    %2119 = vmatprep.subr.mxu0 %v1745
    %2120 = vmatpush1.msra.mxu0 %v1744
    %2121 = vmatprep.subr.mxu0 %v1752
    %2122 = vmatpush1.msra.mxu0 %v1751
    %2123 = vmatprep.subr.mxu0 %v1759
    %2124 = vmatpush1.msra.mxu0 %v1758
    %2125 = vmatprep.subr.mxu0 %v1766
    %2126 = vmatpush1.msra.mxu0 %v1765
    %2127 = vmatprep.subr.mxu0 %v1773
    %2128 = vmatpush1.msra.mxu0 %v1772
    %2129 = vmatprep.subr.mxu0 %v1780
    %2130 = vmatpush1.msra.mxu0 %v1779
    %2131 = vmatprep.subr.mxu0 %v1787
    %2132 = vmatpush1.msra.mxu0 %v1786
    %2133 = vmatprep.subr.mxu0 %v1794
    %2134 = vmatpush1.msra.mxu0 %v1793
    %2135 = vmatprep.subr.mxu0 %v1801
    %2136 = vmatpush1.msra.mxu0 %v1800
    %2137 = vmatprep.subr.mxu0 %v1808
    %2138 = vmatpush1.msra.mxu0 %v1807
    %2139 = vmatprep.mubr.f32.mxu0 %v1587
    %2140 = vmatmul.mubr.f32.gmra.mrb[0].mxu0 %v1586
    %v2141 = vpop.f32.mrb[0].mxu0
    %v2142 = vadd.f32 %v2043, %v2141
    %v2143 = vpop.f32.mrb[0].mxu0
    %v2144 = vadd.f32 %v2047, %v2143
    %2145 = vdwg.mxu0
    %2146 = vmatprep.subr.mxu0 %v1815
    %2147 = vmatpush1.msra.mxu0 %v1814
    %2148 = vmatprep.subr.mxu0 %v1822
    %2149 = vmatpush1.msra.mxu0 %v1821
    %2150 = vmatprep.subr.mxu0 %v1829
    %2151 = vmatpush1.msra.mxu0 %v1828
    %2152 = vmatprep.subr.mxu0 %v1836
    %2153 = vmatpush1.msra.mxu0 %v1835
    %2154 = vmatprep.subr.mxu0 %v1843
    %2155 = vmatpush1.msra.mxu0 %v1842
    %2156 = vmatprep.subr.mxu0 %v1850
    %2157 = vmatpush1.msra.mxu0 %v1849
    %2158 = vmatprep.subr.mxu0 %v1857
    %2159 = vmatpush1.msra.mxu0 %v1856
    %2160 = vmatprep.subr.mxu0 %v1864
    %2161 = vmatpush1.msra.mxu0 %v1863
    %2162 = vmatprep.subr.mxu0 %v1871
    %2163 = vmatpush1.msra.mxu0 %v1870
    %2164 = vmatprep.subr.mxu0 %v1878
    %2165 = vmatpush1.msra.mxu0 %v1877
    %2166 = vmatprep.subr.mxu0 %v1885
    %2167 = vmatpush1.msra.mxu0 %v1884
    %2168 = vmatprep.subr.mxu0 %v1892
    %2169 = vmatpush1.msra.mxu0 %v1891
    %2170 = vmatprep.subr.mxu0 %v1899
    %2171 = vmatpush1.msra.mxu0 %v1898
    %2172 = vmatprep.subr.mxu0 %v1906
    %2173 = vmatpush1.msra.mxu0 %v1905
    %2174 = vmatprep.subr.mxu0 %v1913
    %2175 = vmatpush1.msra.mxu0 %v1912
    %2176 = vmatprep.subr.mxu0 %v1920
    %2177 = vmatpush1.msra.mxu0 %v1919
    %2178 = vmatprep.subr.mxu0 %v1927
    %2179 = vmatpush1.msra.mxu0 %v1926
    %2180 = vmatprep.subr.mxu0 %v1934
    %2181 = vmatpush1.msra.mxu0 %v1933
    %2182 = vmatprep.subr.mxu0 %v1941
    %2183 = vmatpush1.msra.mxu0 %v1940
    %2184 = vmatprep.subr.mxu0 %v1948
    %2185 = vmatpush1.msra.mxu0 %v1947
    %2186 = vmatprep.subr.mxu0 %v1955
    %2187 = vmatpush1.msra.mxu0 %v1954
    %2188 = vmatprep.subr.mxu0 %v1962
    %2189 = vmatpush1.msra.mxu0 %v1961
    %2190 = vmatprep.subr.mxu0 %v1969
    %2191 = vmatpush1.msra.mxu0 %v1968
    %2192 = vmatprep.subr.mxu0 %v1976
    %2193 = vmatpush1.msra.mxu0 %v1975
    %2194 = vmatprep.subr.mxu0 %v1983
    %2195 = vmatpush1.msra.mxu0 %v1982
    %2196 = vmatprep.subr.mxu0 %v1990
    %2197 = vmatpush1.msra.mxu0 %v1989
    %2198 = vmatprep.subr.mxu0 %v1997
    %2199 = vmatpush1.msra.mxu0 %v1996
    %2200 = vmatprep.subr.mxu0 %v2004
    %2201 = vmatpush1.msra.mxu0 %v2003
    %2202 = vmatprep.subr.mxu0 %v2011
    %2203 = vmatpush1.msra.mxu0 %v2010
    %2204 = vmatprep.subr.mxu0 %v2018
    %2205 = vmatpush1.msra.mxu0 %v2017
    %2206 = vmatprep.subr.mxu0 %v2025
    %2207 = vmatpush1.msra.mxu0 %v2024
    %2208 = vmatprep.subr.mxu0 %v2032
    %2209 = vmatpush1.msra.mxu0 %v2031
    %2210 = vmatprep.mubr.f32.mxu0 %v1589
    %2211 = vmatmul.mubr.f32.gmra.mrb[0].mxu0 %v1588
    %v2212 = vpop.f32.mrb[0].mxu0
    %v2213 = vadd.f32 %v2142, %v2212
    %v2214 = vpop.f32.mrb[0].mxu0
    %v2215 = vadd.f32 %v2144, %v2214
    %2216 = vdwg.mxu0
    %2217 = vmatprep.subr.mxu0 %v1593
    %2218 = vmatpush1.msra.mxu0 %v1592
    %2219 = vmatprep.subr.mxu0 %v1600
    %2220 = vmatpush1.msra.mxu0 %v1599
    %2221 = vmatprep.subr.mxu0 %v1607
    %2222 = vmatpush1.msra.mxu0 %v1606
    %2223 = vmatprep.subr.mxu0 %v1614
    %2224 = vmatpush1.msra.mxu0 %v1613
    %2225 = vmatprep.subr.mxu0 %v1621
    %2226 = vmatpush1.msra.mxu0 %v1620
    %2227 = vmatprep.subr.mxu0 %v1628
    %2228 = vmatpush1.msra.mxu0 %v1627
    %2229 = vmatprep.subr.mxu0 %v1635
    %2230 = vmatpush1.msra.mxu0 %v1634
    %2231 = vmatprep.subr.mxu0 %v1642
    %2232 = vmatpush1.msra.mxu0 %v1641
    %2233 = vmatprep.subr.mxu0 %v1649
    %2234 = vmatpush1.msra.mxu0 %v1648
    %2235 = vmatprep.subr.mxu0 %v1656
    %2236 = vmatpush1.msra.mxu0 %v1655
    %2237 = vmatprep.subr.mxu0 %v1663
    %2238 = vmatpush1.msra.mxu0 %v1662
    %2239 = vmatprep.subr.mxu0 %v1670
    %2240 = vmatpush1.msra.mxu0 %v1669
    %2241 = vmatprep.subr.mxu0 %v1677
    %2242 = vmatpush1.msra.mxu0 %v1676
    %2243 = vmatprep.subr.mxu0 %v1684
    %2244 = vmatpush1.msra.mxu0 %v1683
    %2245 = vmatprep.subr.mxu0 %v1691
    %2246 = vmatpush1.msra.mxu0 %v1690
    %2247 = vmatprep.subr.mxu0 %v1698
    %2248 = vmatpush1.msra.mxu0 %v1697
    %2249 = vmatprep.subr.mxu0 %v1705
    %2250 = vmatpush1.msra.mxu0 %v1704
    %2251 = vmatprep.subr.mxu0 %v1712
    %2252 = vmatpush1.msra.mxu0 %v1711
    %2253 = vmatprep.subr.mxu0 %v1719
    %2254 = vmatpush1.msra.mxu0 %v1718
    %2255 = vmatprep.subr.mxu0 %v1726
    %2256 = vmatpush1.msra.mxu0 %v1725
    %2257 = vmatprep.subr.mxu0 %v1733
    %2258 = vmatpush1.msra.mxu0 %v1732
    %2259 = vmatprep.subr.mxu0 %v1740
    %2260 = vmatpush1.msra.mxu0 %v1739
    %2261 = vmatprep.subr.mxu0 %v1747
    %2262 = vmatpush1.msra.mxu0 %v1746
    %2263 = vmatprep.subr.mxu0 %v1754
    %2264 = vmatpush1.msra.mxu0 %v1753
    %2265 = vmatprep.subr.mxu0 %v1761
    %2266 = vmatpush1.msra.mxu0 %v1760
    %2267 = vmatprep.subr.mxu0 %v1768
    %2268 = vmatpush1.msra.mxu0 %v1767
    %2269 = vmatprep.subr.mxu0 %v1775
    %2270 = vmatpush1.msra.mxu0 %v1774
    %2271 = vmatprep.subr.mxu0 %v1782
    %2272 = vmatpush1.msra.mxu0 %v1781
    %2273 = vmatprep.subr.mxu0 %v1789
    %2274 = vmatpush1.msra.mxu0 %v1788
    %2275 = vmatprep.subr.mxu0 %v1796
    %2276 = vmatpush1.msra.mxu0 %v1795
    %2277 = vmatprep.subr.mxu0 %v1803
    %2278 = vmatpush1.msra.mxu0 %v1802
    %2279 = vmatprep.subr.mxu0 %v1810
    %2280 = vmatpush1.msra.mxu0 %v1809
    %2281 = vmatprep.mubr.f32.mxu0 %v1587
    %2282 = vmatmul.mubr.f32.gmra.mrb[0].mxu0 %v1586
    %v2283 = vpop.f32.mrb[0].mxu0
    %v2284 = vadd.f32 %v2051, %v2283
    %v2285 = vpop.f32.mrb[0].mxu0
    %v2286 = vadd.f32 %v2055, %v2285
    %2287 = vdwg.mxu0
    %2288 = vmatprep.subr.mxu0 %v1817
    %2289 = vmatpush1.msra.mxu0 %v1816
    %2290 = vmatprep.subr.mxu0 %v1824
    %2291 = vmatpush1.msra.mxu0 %v1823
    %2292 = vmatprep.subr.mxu0 %v1831
    %2293 = vmatpush1.msra.mxu0 %v1830
    %2294 = vmatprep.subr.mxu0 %v1838
    %2295 = vmatpush1.msra.mxu0 %v1837
    %2296 = vmatprep.subr.mxu0 %v1845
    %2297 = vmatpush1.msra.mxu0 %v1844
    %2298 = vmatprep.subr.mxu0 %v1852
    %2299 = vmatpush1.msra.mxu0 %v1851
    %2300 = vmatprep.subr.mxu0 %v1859
    %2301 = vmatpush1.msra.mxu0 %v1858
    %2302 = vmatprep.subr.mxu0 %v1866
    %2303 = vmatpush1.msra.mxu0 %v1865
    %2304 = vmatprep.subr.mxu0 %v1873
    %2305 = vmatpush1.msra.mxu0 %v1872
    %2306 = vmatprep.subr.mxu0 %v1880
    %2307 = vmatpush1.msra.mxu0 %v1879
    %2308 = vmatprep.subr.mxu0 %v1887
    %2309 = vmatpush1.msra.mxu0 %v1886
    %2310 = vmatprep.subr.mxu0 %v1894
    %2311 = vmatpush1.msra.mxu0 %v1893
    %2312 = vmatprep.subr.mxu0 %v1901
    %2313 = vmatpush1.msra.mxu0 %v1900
    %2314 = vmatprep.subr.mxu0 %v1908
    %2315 = vmatpush1.msra.mxu0 %v1907
    %2316 = vmatprep.subr.mxu0 %v1915
    %2317 = vmatpush1.msra.mxu0 %v1914
    %2318 = vmatprep.subr.mxu0 %v1922
    %2319 = vmatpush1.msra.mxu0 %v1921
    %2320 = vmatprep.subr.mxu0 %v1929
    %2321 = vmatpush1.msra.mxu0 %v1928
    %2322 = vmatprep.subr.mxu0 %v1936
    %2323 = vmatpush1.msra.mxu0 %v1935
    %2324 = vmatprep.subr.mxu0 %v1943
    %2325 = vmatpush1.msra.mxu0 %v1942
    %2326 = vmatprep.subr.mxu0 %v1950
    %2327 = vmatpush1.msra.mxu0 %v1949
    %2328 = vmatprep.subr.mxu0 %v1957
    %2329 = vmatpush1.msra.mxu0 %v1956
    %2330 = vmatprep.subr.mxu0 %v1964
    %2331 = vmatpush1.msra.mxu0 %v1963
    %2332 = vmatprep.subr.mxu0 %v1971
    %2333 = vmatpush1.msra.mxu0 %v1970
    %2334 = vmatprep.subr.mxu0 %v1978
    %2335 = vmatpush1.msra.mxu0 %v1977
    %2336 = vmatprep.subr.mxu0 %v1985
    %2337 = vmatpush1.msra.mxu0 %v1984
    %2338 = vmatprep.subr.mxu0 %v1992
    %2339 = vmatpush1.msra.mxu0 %v1991
    %2340 = vmatprep.subr.mxu0 %v1999
    %2341 = vmatpush1.msra.mxu0 %v1998
    %2342 = vmatprep.subr.mxu0 %v2006
    %2343 = vmatpush1.msra.mxu0 %v2005
    %2344 = vmatprep.subr.mxu0 %v2013
    %2345 = vmatpush1.msra.mxu0 %v2012
    %2346 = vmatprep.subr.mxu0 %v2020
    %2347 = vmatpush1.msra.mxu0 %v2019
    %2348 = vmatprep.subr.mxu0 %v2027
    %2349 = vmatpush1.msra.mxu0 %v2026
    %2350 = vmatprep.subr.mxu0 %v2034
    %2351 = vmatpush1.msra.mxu0 %v2033
    %2352 = vmatprep.mubr.f32.mxu0 %v1589
    %2353 = vmatmul.mubr.f32.gmra.mrb[0].mxu0 %v1588
    %v2354 = vpop.f32.mrb[0].mxu0
    %v2355 = vadd.f32 %v2284, %v2354
    %v2356 = vpop.f32.mrb[0].mxu0
    %v2357 = vadd.f32 %v2286, %v2356
    %2358 = vdwg.mxu0
    %2359 = vmatprep.subr.mxu0 %v1595
    %2360 = vmatpush1.msra.mxu0 %v1594
    %2361 = vmatprep.subr.mxu0 %v1602
    %2362 = vmatpush1.msra.mxu0 %v1601
    %2363 = vmatprep.subr.mxu0 %v1609
    %2364 = vmatpush1.msra.mxu0 %v1608
    %2365 = vmatprep.subr.mxu0 %v1616
    %2366 = vmatpush1.msra.mxu0 %v1615
    %2367 = vmatprep.subr.mxu0 %v1623
    %2368 = vmatpush1.msra.mxu0 %v1622
    %2369 = vmatprep.subr.mxu0 %v1630
    %2370 = vmatpush1.msra.mxu0 %v1629
    %2371 = vmatprep.subr.mxu0 %v1637
    %2372 = vmatpush1.msra.mxu0 %v1636
    %2373 = vmatprep.subr.mxu0 %v1644
    %2374 = vmatpush1.msra.mxu0 %v1643
    %2375 = vmatprep.subr.mxu0 %v1651
    %2376 = vmatpush1.msra.mxu0 %v1650
    %2377 = vmatprep.subr.mxu0 %v1658
    %2378 = vmatpush1.msra.mxu0 %v1657
    %2379 = vmatprep.subr.mxu0 %v1665
    %2380 = vmatpush1.msra.mxu0 %v1664
    %2381 = vmatprep.subr.mxu0 %v1672
    %2382 = vmatpush1.msra.mxu0 %v1671
    %2383 = vmatprep.subr.mxu0 %v1679
    %2384 = vmatpush1.msra.mxu0 %v1678
    %2385 = vmatprep.subr.mxu0 %v1686
    %2386 = vmatpush1.msra.mxu0 %v1685
    %2387 = vmatprep.subr.mxu0 %v1693
    %2388 = vmatpush1.msra.mxu0 %v1692
    %2389 = vmatprep.subr.mxu0 %v1700
    %2390 = vmatpush1.msra.mxu0 %v1699
    %2391 = vmatprep.subr.mxu0 %v1707
    %2392 = vmatpush1.msra.mxu0 %v1706
    %2393 = vmatprep.subr.mxu0 %v1714
    %2394 = vmatpush1.msra.mxu0 %v1713
    %2395 = vmatprep.subr.mxu0 %v1721
    %2396 = vmatpush1.msra.mxu0 %v1720
    %2397 = vmatprep.subr.mxu0 %v1728
    %2398 = vmatpush1.msra.mxu0 %v1727
    %2399 = vmatprep.subr.mxu0 %v1735
    %2400 = vmatpush1.msra.mxu0 %v1734
    %2401 = vmatprep.subr.mxu0 %v1742
    %2402 = vmatpush1.msra.mxu0 %v1741
    %2403 = vmatprep.subr.mxu0 %v1749
    %2404 = vmatpush1.msra.mxu0 %v1748
    %2405 = vmatprep.subr.mxu0 %v1756
    %2406 = vmatpush1.msra.mxu0 %v1755
    %2407 = vmatprep.subr.mxu0 %v1763
    %2408 = vmatpush1.msra.mxu0 %v1762
    %2409 = vmatprep.subr.mxu0 %v1770
    %2410 = vmatpush1.msra.mxu0 %v1769
    %2411 = vmatprep.subr.mxu0 %v1777
    %2412 = vmatpush1.msra.mxu0 %v1776
    %2413 = vmatprep.subr.mxu0 %v1784
    %2414 = vmatpush1.msra.mxu0 %v1783
    %2415 = vmatprep.subr.mxu0 %v1791
    %2416 = vmatpush1.msra.mxu0 %v1790
    %2417 = vmatprep.subr.mxu0 %v1798
    %2418 = vmatpush1.msra.mxu0 %v1797
    %2419 = vmatprep.subr.mxu0 %v1805
    %2420 = vmatpush1.msra.mxu0 %v1804
    %2421 = vmatprep.subr.mxu0 %v1812
    %2422 = vmatpush1.msra.mxu0 %v1811
    %2423 = vmatprep.mubr.f32.mxu0 %v1587
    %2424 = vmatmul.mubr.f32.gmra.mrb[0].mxu0 %v1586
    %v2425 = vpop.f32.mrb[0].mxu0
    %v2426 = vadd.f32 %v2059, %v2425
    %v2427 = vpop.f32.mrb[0].mxu0
    %v2428 = vadd.f32 %v2063, %v2427
    %2429 = vdwg.mxu0
    %2430 = vmatprep.subr.mxu0 %v1819
    %2431 = vmatpush1.msra.mxu0 %v1818
    %2432 = vmatprep.subr.mxu0 %v1826
    %2433 = vmatpush1.msra.mxu0 %v1825
    %2434 = vmatprep.subr.mxu0 %v1833
    %2435 = vmatpush1.msra.mxu0 %v1832
    %2436 = vmatprep.subr.mxu0 %v1840
    %2437 = vmatpush1.msra.mxu0 %v1839
    %2438 = vmatprep.subr.mxu0 %v1847
    %2439 = vmatpush1.msra.mxu0 %v1846
    %2440 = vmatprep.subr.mxu0 %v1854
    %2441 = vmatpush1.msra.mxu0 %v1853
    %2442 = vmatprep.subr.mxu0 %v1861
    %2443 = vmatpush1.msra.mxu0 %v1860
    %2444 = vmatprep.subr.mxu0 %v1868
    %2445 = vmatpush1.msra.mxu0 %v1867
    %2446 = vmatprep.subr.mxu0 %v1875
    %2447 = vmatpush1.msra.mxu0 %v1874
    %2448 = vmatprep.subr.mxu0 %v1882
    %2449 = vmatpush1.msra.mxu0 %v1881
    %2450 = vmatprep.subr.mxu0 %v1889
    %2451 = vmatpush1.msra.mxu0 %v1888
    %2452 = vmatprep.subr.mxu0 %v1896
    %2453 = vmatpush1.msra.mxu0 %v1895
    %2454 = vmatprep.subr.mxu0 %v1903
    %2455 = vmatpush1.msra.mxu0 %v1902
    %2456 = vmatprep.subr.mxu0 %v1910
    %2457 = vmatpush1.msra.mxu0 %v1909
    %2458 = vmatprep.subr.mxu0 %v1917
    %2459 = vmatpush1.msra.mxu0 %v1916
    %2460 = vmatprep.subr.mxu0 %v1924
    %2461 = vmatpush1.msra.mxu0 %v1923
    %2462 = vmatprep.subr.mxu0 %v1931
    %2463 = vmatpush1.msra.mxu0 %v1930
    %2464 = vmatprep.subr.mxu0 %v1938
    %2465 = vmatpush1.msra.mxu0 %v1937
    %2466 = vmatprep.subr.mxu0 %v1945
    %2467 = vmatpush1.msra.mxu0 %v1944
    %2468 = vmatprep.subr.mxu0 %v1952
    %2469 = vmatpush1.msra.mxu0 %v1951
    %2470 = vmatprep.subr.mxu0 %v1959
    %2471 = vmatpush1.msra.mxu0 %v1958
    %2472 = vmatprep.subr.mxu0 %v1966
    %2473 = vmatpush1.msra.mxu0 %v1965
    %2474 = vmatprep.subr.mxu0 %v1973
    %2475 = vmatpush1.msra.mxu0 %v1972
    %2476 = vmatprep.subr.mxu0 %v1980
    %2477 = vmatpush1.msra.mxu0 %v1979
    %2478 = vmatprep.subr.mxu0 %v1987
    %2479 = vmatpush1.msra.mxu0 %v1986
    %2480 = vmatprep.subr.mxu0 %v1994
    %2481 = vmatpush1.msra.mxu0 %v1993
    %2482 = vmatprep.subr.mxu0 %v2001
    %2483 = vmatpush1.msra.mxu0 %v2000
    %2484 = vmatprep.subr.mxu0 %v2008
    %2485 = vmatpush1.msra.mxu0 %v2007
    %2486 = vmatprep.subr.mxu0 %v2015
    %2487 = vmatpush1.msra.mxu0 %v2014
    %2488 = vmatprep.subr.mxu0 %v2022
    %2489 = vmatpush1.msra.mxu0 %v2021
    %2490 = vmatprep.subr.mxu0 %v2029
    %2491 = vmatpush1.msra.mxu0 %v2028
    %2492 = vmatprep.subr.mxu0 %v2036
    %2493 = vmatpush1.msra.mxu0 %v2035
    %2494 = vmatprep.mubr.f32.mxu0 %v1589
    %2495 = vmatmul.mubr.f32.gmra.mrb[0].mxu0 %v1588
    %v2496 = vpop.f32.mrb[0].mxu0
    %v2497 = vadd.f32 %v2426, %v2496
    %v2498 = vpop.f32.mrb[0].mxu0
    %v2499 = vadd.f32 %v2428, %v2498
    %2500 = vdwg.mxu0
    %2501 = vmatprep.subr.mxu0 0.0
    %2502 = vmatpush1.msra.mxu0 %v1596
    %2503 = vmatprep.subr.mxu0 0.0
    %2504 = vmatpush1.msra.mxu0 %v1603
    %2505 = vmatprep.subr.mxu0 0.0
    %2506 = vmatpush1.msra.mxu0 %v1610
    %2507 = vmatprep.subr.mxu0 0.0
    %2508 = vmatpush1.msra.mxu0 %v1617
    %2509 = vmatprep.subr.mxu0 0.0
    %2510 = vmatpush1.msra.mxu0 %v1624
    %2511 = vmatprep.subr.mxu0 0.0
    %2512 = vmatpush1.msra.mxu0 %v1631
    %2513 = vmatprep.subr.mxu0 0.0
    %2514 = vmatpush1.msra.mxu0 %v1638
    %2515 = vmatprep.subr.mxu0 0.0
    %2516 = vmatpush1.msra.mxu0 %v1645
    %2517 = vmatprep.subr.mxu0 0.0
    %2518 = vmatpush1.msra.mxu0 %v1652
    %2519 = vmatprep.subr.mxu0 0.0
    %2520 = vmatpush1.msra.mxu0 %v1659
    %2521 = vmatprep.subr.mxu0 0.0
    %2522 = vmatpush1.msra.mxu0 %v1666
    %2523 = vmatprep.subr.mxu0 0.0
    %2524 = vmatpush1.msra.mxu0 %v1673
    %2525 = vmatprep.subr.mxu0 0.0
    %2526 = vmatpush1.msra.mxu0 %v1680
    %2527 = vmatprep.subr.mxu0 0.0
    %2528 = vmatpush1.msra.mxu0 %v1687
    %2529 = vmatprep.subr.mxu0 0.0
    %2530 = vmatpush1.msra.mxu0 %v1694
    %2531 = vmatprep.subr.mxu0 0.0
    %2532 = vmatpush1.msra.mxu0 %v1701
    %2533 = vmatprep.subr.mxu0 0.0
    %2534 = vmatpush1.msra.mxu0 %v1708
    %2535 = vmatprep.subr.mxu0 0.0
    %2536 = vmatpush1.msra.mxu0 %v1715
    %2537 = vmatprep.subr.mxu0 0.0
    %2538 = vmatpush1.msra.mxu0 %v1722
    %2539 = vmatprep.subr.mxu0 0.0
    %2540 = vmatpush1.msra.mxu0 %v1729
    %2541 = vmatprep.subr.mxu0 0.0
    %2542 = vmatpush1.msra.mxu0 %v1736
    %2543 = vmatprep.subr.mxu0 0.0
    %2544 = vmatpush1.msra.mxu0 %v1743
    %2545 = vmatprep.subr.mxu0 0.0
    %2546 = vmatpush1.msra.mxu0 %v1750
    %2547 = vmatprep.subr.mxu0 0.0
    %2548 = vmatpush1.msra.mxu0 %v1757
    %2549 = vmatprep.subr.mxu0 0.0
    %2550 = vmatpush1.msra.mxu0 %v1764
    %2551 = vmatprep.subr.mxu0 0.0
    %2552 = vmatpush1.msra.mxu0 %v1771
    %2553 = vmatprep.subr.mxu0 0.0
    %2554 = vmatpush1.msra.mxu0 %v1778
    %2555 = vmatprep.subr.mxu0 0.0
    %2556 = vmatpush1.msra.mxu0 %v1785
    %2557 = vmatprep.subr.mxu0 0.0
    %2558 = vmatpush1.msra.mxu0 %v1792
    %2559 = vmatprep.subr.mxu0 0.0
    %2560 = vmatpush1.msra.mxu0 %v1799
    %2561 = vmatprep.subr.mxu0 0.0
    %2562 = vmatpush1.msra.mxu0 %v1806
    %2563 = vmatprep.subr.mxu0 0.0
    %2564 = vmatpush1.msra.mxu0 %v1813
    %2565 = vmatprep.mubr.f32.mxu0 %v1587
    %2566 = vmatmul.mubr.f32.gmra.mrb[0].mxu0 %v1586
    %v2567 = vpop.f32.mrb[0].mxu0
    %v2568 = vadd.f32 %v2067, %v2567
    %v2569 = vpop.f32.mrb[0].mxu0
    %2570 = vdwg.mxu0
    %2571 = vmatprep.subr.mxu0 0.0
    %2572 = vmatpush1.msra.mxu0 %v1820
    %2573 = vmatprep.subr.mxu0 0.0
    %2574 = vmatpush1.msra.mxu0 %v1827
    %2575 = vmatprep.subr.mxu0 0.0
    %2576 = vmatpush1.msra.mxu0 %v1834
    %2577 = vmatprep.subr.mxu0 0.0
    %2578 = vmatpush1.msra.mxu0 %v1841
    %2579 = vmatprep.subr.mxu0 0.0
    %2580 = vmatpush1.msra.mxu0 %v1848
    %2581 = vmatprep.subr.mxu0 0.0
    %2582 = vmatpush1.msra.mxu0 %v1855
    %2583 = vmatprep.subr.mxu0 0.0
    %2584 = vmatpush1.msra.mxu0 %v1862
    %2585 = vmatprep.subr.mxu0 0.0
    %2586 = vmatpush1.msra.mxu0 %v1869
    %2587 = vmatprep.subr.mxu0 0.0
    %2588 = vmatpush1.msra.mxu0 %v1876
    %2589 = vmatprep.subr.mxu0 0.0
    %2590 = vmatpush1.msra.mxu0 %v1883
    %2591 = vmatprep.subr.mxu0 0.0
    %2592 = vmatpush1.msra.mxu0 %v1890
    %2593 = vmatprep.subr.mxu0 0.0
    %2594 = vmatpush1.msra.mxu0 %v1897
    %2595 = vmatprep.subr.mxu0 0.0
    %2596 = vmatpush1.msra.mxu0 %v1904
    %2597 = vmatprep.subr.mxu0 0.0
    %2598 = vmatpush1.msra.mxu0 %v1911
    %2599 = vmatprep.subr.mxu0 0.0
    %2600 = vmatpush1.msra.mxu0 %v1918
    %2601 = vmatprep.subr.mxu0 0.0
    %2602 = vmatpush1.msra.mxu0 %v1925
    %2603 = vmatprep.subr.mxu0 0.0
    %2604 = vmatpush1.msra.mxu0 %v1932
    %2605 = vmatprep.subr.mxu0 0.0
    %2606 = vmatpush1.msra.mxu0 %v1939
    %2607 = vmatprep.subr.mxu0 0.0
    %2608 = vmatpush1.msra.mxu0 %v1946
    %2609 = vmatprep.subr.mxu0 0.0
    %2610 = vmatpush1.msra.mxu0 %v1953
    %2611 = vmatprep.subr.mxu0 0.0
    %2612 = vmatpush1.msra.mxu0 %v1960
    %2613 = vmatprep.subr.mxu0 0.0
    %2614 = vmatpush1.msra.mxu0 %v1967
    %2615 = vmatprep.subr.mxu0 0.0
    %2616 = vmatpush1.msra.mxu0 %v1974
    %2617 = vmatprep.subr.mxu0 0.0
    %2618 = vmatpush1.msra.mxu0 %v1981
    %2619 = vmatprep.subr.mxu0 0.0
    %2620 = vmatpush1.msra.mxu0 %v1988
    %2621 = vmatprep.subr.mxu0 0.0
    %2622 = vmatpush1.msra.mxu0 %v1995
    %2623 = vmatprep.subr.mxu0 0.0
    %2624 = vmatpush1.msra.mxu0 %v2002
    %2625 = vmatprep.subr.mxu0 0.0
    %2626 = vmatpush1.msra.mxu0 %v2009
    %2627 = vmatprep.subr.mxu0 0.0
    %2628 = vmatpush1.msra.mxu0 %v2016
    %2629 = vmatprep.subr.mxu0 0.0
    %2630 = vmatpush1.msra.mxu0 %v2023
    %2631 = vmatprep.subr.mxu0 0.0
    %2632 = vmatpush1.msra.mxu0 %v2030
    %2633 = vmatprep.subr.mxu0 0.0
    %2634 = vmatpush1.msra.mxu0 %v2037
    %2635 = vmatprep.mubr.f32.mxu0 %v1589
    %2636 = vmatmul.mubr.f32.gmra.mrb[0].mxu0 %v1588
    %v2637 = vpop.f32.mrb[0].mxu0
    %v2638 = vadd.f32 %v2568, %v2637
    %v2639 = vpop.f32.mrb[0].mxu0
    %2640 = vdwg.mxu0
    %v2641 = vxor.u32 %v2213, 2147483648
    %v2642 = vxor.u32 %v2215, 2147483648
    %v2643 = vxor.u32 %v2355, 2147483648
    %v2644 = vxor.u32 %v2357, 2147483648
    %v2645 = vxor.u32 %v2497, 2147483648
    %v2646 = vxor.u32 %v2499, 2147483648
    %v2647 = vxor.u32 %v2638, 2147483648
    %v2648 = vmul.f32 %v2641, 1.442695
    %v2649 = vpow.pop %v2648
    %v2650 = vmul.f32 %v2642, 1.442695
    %v2651 = vpow.pop %v2650
    %v2652 = vmul.f32 %v2643, 1.442695
    %v2653 = vpow.pop %v2652
    %v2654 = vmul.f32 %v2644, 1.442695
    %v2655 = vpow.pop %v2654
    %v2656 = vmul.f32 %v2645, 1.442695
    %v2657 = vpow.pop %v2656
    %v2658 = vmul.f32 %v2646, 1.442695
    %v2659 = vpow.pop %v2658
    %v2660 = vmul.f32 %v2647, 1.442695
    %v2661 = vpow.pop %v2660
    %v2662 = vadd.f32 %v2649, 1.0
    %v2663 = vadd.f32 %v2651, 1.0
    %v2664 = vadd.f32 %v2653, 1.0
    %v2665 = vadd.f32 %v2655, 1.0
    %v2666 = vadd.f32 %v2657, 1.0
    %v2667 = vadd.f32 %v2659, 1.0
    %v2668 = vadd.f32 %v2661, 1.0
    %v2669 = vrcp.pop %v2662
    %v2670 = vmul.f32 1.0, %v2669
    %v2671 = vrcp.pop %v2663
    %v2672 = vmul.f32 1.0, %v2671
    %v2673 = vrcp.pop %v2664
    %v2674 = vmul.f32 1.0, %v2673
    %v2675 = vrcp.pop %v2665
    %v2676 = vmul.f32 1.0, %v2675
    %v2677 = vrcp.pop %v2666
    %v2678 = vmul.f32 1.0, %v2677
    %v2679 = vrcp.pop %v2667
    %v2680 = vmul.f32 1.0, %v2679
    %v2681 = vrcp.pop %v2668
    %v2682 = vmul.f32 1.0, %v2681
    %2683 = vst [vmem:[#allocation2] sm:$0xff] %v2670
    %2684 = vst [vmem:[#allocation2 + $0x8] sm:$0xff] %v2672
    %2685 = vst [vmem:[#allocation2 + $0x10] sm:$0xff] %v2674
    %2686 = vst [vmem:[#allocation2 + $0x18] sm:$0xff] %v2676
    %2687 = vst [vmem:[#allocation2 + $0x20] sm:$0xff] %v2678
    %2688 = vst [vmem:[#allocation2 + $0x28] sm:$0xff] %v2680
    %2689 = vst.msk [vmem:[#allocation2 + $0x30] sm:$0xff] %vm448, %v2682
    // Predicated region
    $region30: #{tpu_custom_call.1} parent=1 // pred_check
      _
    $region31: #{tpu_custom_call.1} parent=1 // pred_check_branch
      %2691 = sbr.rel (0) target = $region33
    $region32: #{tpu_custom_call.1} parent=1 // pred_region
      %s2693 = ssub.s32 896, 896
      %2694 = vsyncadd [#allocation3], %s2693
      %s2696 = sshll.u32 [#allocation2], 4
      %s2697 = int_to_ptr.vmem [resolvable:$true] %s2696
      %2699 = dma.vmem_to_hbm [thread:$0]  %s2697, 896, %s7, [#allocation3]
    $region33: #{tpu_custom_call.1} parent=1 // pred_fallthru
      _
    // Predicated region
    $region34: #{tpu_custom_call.1} parent=1 // pred_check
      _
    $region35: #{tpu_custom_call.1} parent=1 // pred_check_branch
      %2701 = sbr.rel (0) target = $region37
    $region36: #{tpu_custom_call.1} parent=1 // pred_region
      %2702 = dma.done [#allocation3], 896
    $region37: #{tpu_custom_call.1} parent=1 // pred_fallthru
      _
    %2703 = vsyncpa [#allocation3], 1

</llo_original>
